<compile_context>
chip_gen: v7x
topology: tpu7x:2x2x1
jax: 0.10.0
libtpu: 0.0.40
codegen_flags: <defaults>
</compile_context>

<pallas_src>
import functools

import jax
import jax.numpy as jnp
from jax import lax
from jax.experimental import pallas as pl
from jax.experimental.pallas import tpu as pltpu


def _first_argmax(x, num_classes):
    """f32 one-hot and int32 index column of the first (lowest-index) row max."""
    col = lax.broadcasted_iota(jnp.int32, x.shape, 1)
    is_max = x == jnp.max(x, axis=1, keepdims=True)
    first = jnp.min(jnp.where(is_max, col, num_classes), axis=1, keepdims=True)
    return (col == first).astype(jnp.float32), first


def _gates_and_masks(logits, gumbel):
    """Softmax gates, top-1 / top-2 one-hot masks and their expert indices."""
    E = logits.shape[1]
    z = logits - jnp.max(logits, axis=1, keepdims=True)
    # argmax(z) == argmax(softmax(logits)); taking top-1 from the shifted
    # logits keeps the mask/count path off the EUP exp + divide chain.
    mask1, idx1 = _first_argmax(z, E)
    ez = jnp.exp(z)
    gates = ez / jnp.sum(ez, axis=1, keepdims=True)
    masked = jnp.where(mask1 > 0.5, -jnp.inf, logits + gumbel)
    mask2, idx2 = _first_argmax(masked, E)
    return gates, mask1, idx1, mask2, idx2


def _stats_kernel(x_ref, w_ref, gum_ref, logits_ref, stats_ref):
    # bf16 operands, f32 accumulation on the MXU.
    # TODO(synk): for very large D on v7x, tile the D (K) axis with an
    # "arbitrary" reduction axis + f32 VMEM accumulator instead of loading the
    # full (T, D) x tile.
    logits = jnp.dot(x_ref[...], w_ref[...], preferred_element_type=jnp.float32)
    gates, mask1, _, mask2, _ = _gates_and_masks(logits, gum_ref[...])
    logits_ref[...] = logits
    E = logits.shape[1]
    cnt1 = jnp.sum(mask1, axis=0, keepdims=True)                  # (1, E)
    cnt2 = jnp.sum(mask2, axis=0, keepdims=True)
    gsum = jnp.sum(gates, axis=0, keepdims=True)
    stats_ref[...] = jnp.concatenate(
        [cnt1, cnt2, gsum, jnp.zeros((5, E), jnp.float32)], axis=0)[None]


def _combine_kernel(tril_ref, logits_ref, gum_ref, offs_ref, jcol_ref,
                    cw_ref, dm_ref, tok_ref, *, capacity):
    c = pl.program_id(1)

    # Per-token-tile gating / prefix math runs once (capacity axis is the inner
    # "arbitrary" grid axis) and is cached in the (T, 8) VMEM scratch.
    @pl.when(c == 0)
    def _():
        logits = logits_ref[...]                                   # (T, E) f32
        T, E = logits.shape
        C = capacity
        gates, mask1, idx1, mask2, idx2 = _gates_and_masks(logits, gum_ref[...])

        # Token cumsum within the tile: one fused lower-triangular (T,T)x(T,2E)
        # bf16 matmul (0/1 operands exact, f32 accumulation). The tril operand
        # is a resident VMEM input, not rebuilt from iotas each step.
        col2 = lax.broadcasted_iota(jnp.int32, (T, 2 * E), 1)
        m12 = jnp.logical_or(col2 == idx1, col2 == idx2 + E).astype(jnp.bfloat16)
        pref = jnp.dot(tril_ref[...], m12, preferred_element_type=jnp.float32)

        # Cross-tile carries: off1 = top-1 tokens routed to each expert in
        # earlier tiles; off2 additionally includes the global top-1 total.
        off = offs_ref[0]                                          # (8, E)
        loc1 = pref[:, :E] - 1.0 + off[0:1, :]
        loc2 = pref[:, E:] - 1.0 + off[1:2, :]

        # Drop tokens over capacity.
        mask1 = mask1 * (loc1 < C).astype(jnp.float32)
        mask2 = mask2 * (loc2 < C).astype(jnp.float32)

        loc1_s = jnp.sum(loc1 * mask1, axis=1, keepdims=True)      # (T, 1)
        loc2_s = jnp.sum(loc2 * mask2, axis=1, keepdims=True)
        g1 = jnp.sum(gates * mask1, axis=1, keepdims=True)
        g2 = jnp.sum(gates * mask2, axis=1, keepdims=True)
        denom = jnp.maximum(g1 + g2, jnp.float32(jnp.finfo(jnp.float32).eps))
        g1 = g1 / denom
        g2 = g2 / denom

        # Flat combine column per token (exact small integers in f32).
        flat1 = idx1.astype(jnp.float32) * C + loc1_s              # (T, 1)
        flat2 = idx2.astype(jnp.float32) * C + loc2_s
        tok_ref[...] = jnp.concatenate(
            [flat1, flat2, g1, g2, jnp.zeros((T, 4), jnp.float32)], axis=1)

    # Every capacity block: two broadcast compares against the cached (T, 1)
    # columns; no (T, E*C) iota and no extra f32 compare for the dispatch mask.
    jrow = jcol_ref[...]                                           # (1, C_BLK)
    flat1 = tok_ref[:, 0:1]
    flat2 = tok_ref[:, 1:2]
    g1 = tok_ref[:, 2:3]
    g2 = tok_ref[:, 3:4]
    sel1 = jrow == flat1                                           # (T, C_BLK)
    sel2 = jrow == flat2
    cw_ref[...] = (g1 * sel1.astype(jnp.float32)
                   + g2 * sel2.astype(jnp.float32)).astype(cw_ref.dtype)
    dm_ref[...] = jnp.logical_or(jnp.logical_and(sel1, g1 > 0.0),
                                 jnp.logical_and(sel2, g2 > 0.0)).astype(jnp.int8)


def _pick_capacity_block(ec, max_block):
    """Largest multiple-of-128 divisor of E*C that is <= max_block."""
    if ec <= max_block:
        return ec
    for cb in range(max_block - max_block % 128, 127, -128):
        if ec % cb == 0:
            return cb
    return ec  # fallback: single (full-width) block


def _vmem_budget_bytes():
    try:
        cap = int(pltpu.get_tpu_info().vmem_capacity_bytes)
    except Exception:
        cap = 64 * 1024 * 1024  # conservative fallback (v7x per-TC VMEM)
    return int(0.8 * cap)       # leave headroom for compiler internal scratch


def _vmem_limit_bytes(T, D, E, c_blk):
    f32, bf16, i8 = 4, 2, 1
    est = (
        # pass 1: double-buffered x / gumbel tiles, resident gate weight,
        # logits + packed-stats output tiles.
        2 * (T * D * bf16 + T * E * f32)
        + D * E * bf16
        + 2 * (T * E * f32 + 8 * E * f32)
        # pass 2: resident tril, double-buffered logits/gumbel/offsets/column
        # constant, combine (dtype<=f32) + dispatch (i8) tiles, temporaries.
        + T * T * bf16
        + 2 * (2 * T * E * f32 + 8 * E * f32 + c_blk * f32)
        + 2 * (T * c_blk * (f32 + i8))
        + 4 * T * c_blk * f32
        + 4 * T * E * f32
    )
    return int(min(max(2 * est, 8 * 1024 * 1024), _vmem_budget_bytes()))


@functools.partial(jax.jit, static_argnames=("block_tokens", "capacity_block"))
def top2gate(x, w, gumbel, *, block_tokens=256, capacity_block=2048):
    """x: (S, D) tokens; w: (D, E) gate weight (pre-transposed); gumbel: (S, E)."""
    S, D = x.shape
    E = w.shape[1]
    assert S % E == 0, "num_tokens must be divisible by num_experts"
    C = 2 * S // E
    EC = E * C
    T = min(block_tokens, S)
    assert S % T == 0, "num_tokens must be divisible by the token tile"
    # Keep tile rows aligned with f32/bf16/int8 sublane tiling unless untiled.
    assert T == S or T % 32 == 0
    nt = S // T
    c_blk = _pick_capacity_block(EC, capacity_block)
    nc = EC // c_blk

    x_bf = x.astype(jnp.bfloat16)
    w_bf = w.astype(jnp.bfloat16)
    gumbel = gumbel.astype(jnp.float32)
    vmem_limit = _vmem_limit_bytes(T, D, E, c_blk)

    # ---------- pass 1: f32 logits + packed per-tile, per-expert stats ----------
    logits, stats = pl.pallas_call(
        _stats_kernel,
        grid=(nt,),
        in_specs=[
            pl.BlockSpec((T, D), lambda t: (t, 0)),
            pl.BlockSpec((D, E), lambda t: (0, 0)),
            pl.BlockSpec((T, E), lambda t: (t, 0)),
        ],
        out_specs=(
            pl.BlockSpec((T, E), lambda t: (t, 0)),
            pl.BlockSpec((1, 8, E), lambda t: (t, 0, 0)),
        ),
        out_shape=(
            jax.ShapeDtypeStruct((S, E), jnp.float32),
            jax.ShapeDtypeStruct((nt, 8, E), jnp.float32),
        ),
        compiler_params=pltpu.CompilerParams(
            dimension_semantics=("parallel",),
            vmem_limit_bytes=vmem_limit),
    )(x_bf, w_bf, gumbel)

    # ---------- tiny O(nt*E) glue: cross-tile prefixes + aux loss ----------
    cnt1 = stats[:, 0, :]
    cnt2 = stats[:, 1, :]
    gsum = stats[:, 2, :]
    total1 = jnp.sum(cnt1, axis=0)                         # (E,)
    off1 = jnp.cumsum(cnt1, axis=0) - cnt1                 # exclusive prefix (nt, E)
    off2 = jnp.cumsum(cnt2, axis=0) - cnt2 + total1[None, :]
    me = jnp.sum(gsum, axis=0) / S
    ce = total1 / S
    l_aux = jnp.mean(me * ce)
    offs = jnp.concatenate(
        [off1[:, None, :], off2[:, None, :], jnp.zeros((nt, 6, E), jnp.float32)],
        axis=1)                                            # (nt, 8, E)

    # Resident constants for pass 2 (hoisted out of the per-step kernel body).
    tril = jnp.tril(jnp.ones((T, T), dtype=jnp.bfloat16))
    jcol = jnp.arange(EC, dtype=jnp.float32)[None, :]      # (1, E*C)

    # ---------- pass 2: lane-dense combine weights + dispatch mask ----------
    # NOTE: logits are kept in f32 between the passes so tie-breaking in the
    # recomputed masks matches the pass-1 counts exactly.
    cw_flat, dm_flat = pl.pallas_call(
        functools.partial(_combine_kernel, capacity=C),
        grid=(nt, nc),
        in_specs=[
            pl.BlockSpec((T, T), lambda t, c: (0, 0)),      # resident tril
            pl.BlockSpec((T, E), lambda t, c: (t, 0)),
            pl.BlockSpec((T, E), lambda t, c: (t, 0)),
            pl.BlockSpec((1, 8, E), lambda t, c: (t, 0, 0)),
            pl.BlockSpec((1, c_blk), lambda t, c: (0, c)),  # column indices
        ],
        out_specs=(
            pl.BlockSpec((T, c_blk), lambda t, c: (t, c)),
            pl.BlockSpec((T, c_blk), lambda t, c: (t, c)),
        ),
        out_shape=(
            jax.ShapeDtypeStruct((S, EC), x.dtype),
            jax.ShapeDtypeStruct((S, EC), jnp.int8),
        ),
        scratch_shapes=[pltpu.VMEM((T, 8), jnp.float32)],
        compiler_params=pltpu.CompilerParams(
            dimension_semantics=("parallel", "arbitrary"),
            vmem_limit_bytes=vmem_limit),
    )(tril, logits, gumbel, offs, jcol)

    combine_weights = cw_flat.reshape(S, E, C)
    dispatch_mask = dm_flat.reshape(S, E, C).astype(jnp.bool_)
    return l_aux.astype(x.dtype), combine_weights, dispatch_mask


def _reference(x, w, gumbel):
    """Plain-JAX mirror of torch top2gating (bf16 gate matmul, f32 elsewhere)."""
    logits = jnp.dot(x.astype(jnp.bfloat16), w.astype(jnp.bfloat16),
                     preferred_element_type=jnp.float32)
    gates = jax.nn.softmax(logits, axis=1)
    S, E = gates.shape
    C = 2 * S // E
    mask1 = jax.nn.one_hot(jnp.argmax(gates, axis=1), E, dtype=jnp.float32)
    le1 = jnp.where(mask1 > 0, -jnp.inf, logits + gumbel)
    mask2 = jax.nn.one_hot(jnp.argmax(le1, axis=1), E, dtype=jnp.float32)
    loc1 = jnp.cumsum(mask1, axis=0) - 1
    loc2 = jnp.cumsum(mask2, axis=0) - 1 + jnp.sum(mask1, axis=0, keepdims=True)
    l_aux = jnp.mean(jnp.mean(gates, axis=0) * jnp.mean(mask1, axis=0))
    mask1 = mask1 * (loc1 < C)
    mask2 = mask2 * (loc2 < C)
    loc1_s = jnp.sum(loc1 * mask1, axis=1)
    loc2_s = jnp.sum(loc2 * mask2, axis=1)
    g1 = jnp.sum(gates * mask1, axis=1)
    g2 = jnp.sum(gates * mask2, axis=1)
    denom = jnp.maximum(g1 + g2, jnp.finfo(jnp.float32).eps)
    g1, g2 = g1 / denom, g2 / denom
    c1 = (g1[:, None] * mask1)[:, :, None] * jax.nn.one_hot(loc1_s.astype(jnp.int32), C)[:, None, :]
    c2 = (g2[:, None] * mask2)[:, :, None] * jax.nn.one_hot(loc2_s.astype(jnp.int32), C)[:, None, :]
    cw = c1 + c2
    return l_aux, cw, cw > 0


if __name__ == "__main__":
    key = jax.random.PRNGKey(0)
    k_x, k_w, k_g = jax.random.split(key, 3)

    # num_tokens=64, model_dim=32, num_experts=4 -> capacity = 2*64//4 = 32
    S, D, E = 64, 32, 4
    x = jax.random.normal(k_x, (S, D), dtype=jnp.float32)
    bound = 1.0 / (D ** 0.5)  # nn.Linear-style uniform init, deterministic
    w = jax.random.uniform(k_w, (D, E), minval=-bound, maxval=bound, dtype=jnp.float32)
    # TODO(synk): Gumbel noise (torch gumbel_rsample) is generated with jax.random
    # outside the kernel and passed in; in-kernel pltpu.prng_* could replace it if
    # matching a host RNG stream is not required.
    gumbel = jax.random.gumbel(k_g, (S, E), dtype=jnp.float32)

    # block_tokens=32 -> 2 token tiles, exercising the cross-tile cumsum carries.
    l_aux, cw, dm = top2gate(x, w, gumbel, block_tokens=32)
    jax.block_until_ready((l_aux, cw, dm))

    # sanity check against a plain-JAX reference (same gumbel noise)
    l_ref, cw_ref, dm_ref = _reference(x, w, gumbel)
    assert jnp.allclose(l_aux, l_ref, atol=1e-6), (l_aux, l_ref)
    assert jnp.allclose(cw, cw_ref, atol=1e-5), float(jnp.max(jnp.abs(cw - cw_ref)))
    assert bool(jnp.all(dm == dm_ref))

    print("KERNEL_OK")
</pallas_src>

<mosaic_0001>
module attributes {stable_mosaic.version = 11 : i64} {
  func.func @_stats_kernel(%arg0: i32, %arg1: memref<32x32xbf16, #tpu.memory_space<vmem>>, %arg2: memref<32x4xbf16, #tpu.memory_space<vmem>>, %arg3: memref<32x4xf32, #tpu.memory_space<vmem>>, %arg4: memref<32x4xf32, #tpu.memory_space<vmem>>, %arg5: memref<1x8x4xf32, #tpu.memory_space<vmem>>) attributes {dimension_semantics = [#tpu.dimension_semantics<parallel>], iteration_bounds = array<i64: 2>, scalar_prefetch = 0 : i64, scratch_operands = 0 : i64, tpu.core_type = #tpu.core_type<tc>, window_params = [{transform_indices = @transform_0, window_bounds = array<i64: 32, 32>}, {pipeline_mode = #tpu.pipeline_mode<synchronous>, transform_indices = @transform_1, window_bounds = array<i64: 32, 4>}, {transform_indices = @transform_2, window_bounds = array<i64: 32, 4>}, {transform_indices = @transform_3, window_bounds = array<i64: 32, 4>}, {transform_indices = @transform_4, window_bounds = array<i64: 1, 8, 4>}]} {
    %c0 = arith.constant 0 : index
    %c0_0 = arith.constant 0 : index
    %0 = vector.load %arg1[%c0, %c0_0] : memref<32x32xbf16, #tpu.memory_space<vmem>>, vector<32x32xbf16>
    %c0_1 = arith.constant 0 : index
    %c0_2 = arith.constant 0 : index
    %1 = vector.load %arg2[%c0_1, %c0_2] : memref<32x4xbf16, #tpu.memory_space<vmem>>, vector<32x4xbf16>
    %cst = arith.constant dense<0.000000e+00> : vector<32x4xf32>
    %2 = tpu.matmul %0, %1, %cst {dimension_numbers = #tpu.dot_dimension_numbers<[1], [0], [0], [1], [0, 0, 1, 1], [], []>} : vector<32x32xbf16>, vector<32x4xbf16>, vector<32x4xf32> -> vector<32x4xf32>
    %c0_3 = arith.constant 0 : index
    %c0_4 = arith.constant 0 : index
    %3 = vector.load %arg3[%c0_3, %c0_4] : memref<32x4xf32, #tpu.memory_space<vmem>>, vector<32x4xf32>
    %cst_5 = arith.constant dense<0xFF800000> : vector<32xf32>
    %4 = vector.multi_reduction <maximumf>, %2, %cst_5 [1] : vector<32x4xf32> to vector<32xf32>
    %5 = vector.shape_cast %4 : vector<32xf32> to vector<32x1xf32>
    %6 = vector.broadcast %5 : vector<32x1xf32> to vector<32x4xf32>
    %7 = arith.subf %2, %6 : vector<32x4xf32>
    %8 = tpu.iota {dimensions = array<i32: 1>} : vector<32x4xi32>
    %cst_6 = arith.constant dense<0xFF800000> : vector<32xf32>
    %9 = vector.multi_reduction <maximumf>, %7, %cst_6 [1] : vector<32x4xf32> to vector<32xf32>
    %10 = vector.shape_cast %9 : vector<32xf32> to vector<32x1xf32>
    %11 = vector.broadcast %10 : vector<32x1xf32> to vector<32x4xf32>
    %12 = arith.cmpf oeq, %7, %11 : vector<32x4xf32>
    %c4_i32 = arith.constant 4 : i32
    %13 = vector.broadcast %c4_i32 : i32 to vector<32x4xi32>
    %14 = arith.select %12, %8, %13 : vector<32x4xi1>, vector<32x4xi32>
    %cst_7 = arith.constant dense<2147483647> : vector<32xi32>
    %15 = vector.multi_reduction <minsi>, %14, %cst_7 [1] : vector<32x4xi32> to vector<32xi32>
    %16 = vector.shape_cast %15 : vector<32xi32> to vector<32x1xi32>
    %17 = vector.broadcast %16 : vector<32x1xi32> to vector<32x4xi32>
    %18 = arith.cmpi eq, %8, %17 : vector<32x4xi32>
    %19 = arith.extui %18 : vector<32x4xi1> to vector<32x4xi32>
    %20 = arith.sitofp %19 : vector<32x4xi32> to vector<32x4xf32>
    %21 = math.exp %7 : vector<32x4xf32>
    %cst_8 = arith.constant dense<0.000000e+00> : vector<32xf32>
    %22 = vector.multi_reduction <add>, %21, %cst_8 [1] : vector<32x4xf32> to vector<32xf32>
    %23 = vector.shape_cast %22 : vector<32xf32> to vector<32x1xf32>
    %24 = vector.broadcast %23 : vector<32x1xf32> to vector<32x4xf32>
    %25 = arith.divf %21, %24 : vector<32x4xf32>
    %cst_9 = arith.constant 5.000000e-01 : f32
    %26 = vector.broadcast %cst_9 : f32 to vector<32x4xf32>
    %27 = arith.cmpf ogt, %20, %26 : vector<32x4xf32>
    %28 = arith.addf %2, %3 : vector<32x4xf32>
    %cst_10 = arith.constant 0xFF800000 : f32
    %29 = vector.broadcast %cst_10 : f32 to vector<32x4xf32>
    %30 = arith.select %27, %29, %28 : vector<32x4xi1>, vector<32x4xf32>
    %31 = tpu.iota {dimensions = array<i32: 1>} : vector<32x4xi32>
    %cst_11 = arith.constant dense<0xFF800000> : vector<32xf32>
    %32 = vector.multi_reduction <maximumf>, %30, %cst_11 [1] : vector<32x4xf32> to vector<32xf32>
    %33 = vector.shape_cast %32 : vector<32xf32> to vector<32x1xf32>
    %34 = vector.broadcast %33 : vector<32x1xf32> to vector<32x4xf32>
    %35 = arith.cmpf oeq, %30, %34 : vector<32x4xf32>
    %c4_i32_12 = arith.constant 4 : i32
    %36 = vector.broadcast %c4_i32_12 : i32 to vector<32x4xi32>
    %37 = arith.select %35, %31, %36 : vector<32x4xi1>, vector<32x4xi32>
    %cst_13 = arith.constant dense<2147483647> : vector<32xi32>
    %38 = vector.multi_reduction <minsi>, %37, %cst_13 [1] : vector<32x4xi32> to vector<32xi32>
    %39 = vector.shape_cast %38 : vector<32xi32> to vector<32x1xi32>
    %40 = vector.broadcast %39 : vector<32x1xi32> to vector<32x4xi32>
    %41 = arith.cmpi eq, %31, %40 : vector<32x4xi32>
    %42 = arith.extui %41 : vector<32x4xi1> to vector<32x4xi32>
    %43 = arith.sitofp %42 : vector<32x4xi32> to vector<32x4xf32>
    %c0_14 = arith.constant 0 : index
    %c0_15 = arith.constant 0 : index
    %44 = vector.load %arg4[%c0_14, %c0_15] : memref<32x4xf32, #tpu.memory_space<vmem>>, vector<32x4xf32>
    tpu.vector_store %arg4[%c0_14, %c0_15], %2 {strides = array<i32>} : memref<32x4xf32, #tpu.memory_space<vmem>>, vector<32x4xf32>,
    %cst_16 = arith.constant dense<0.000000e+00> : vector<4xf32>
    %45 = vector.multi_reduction <add>, %20, %cst_16 [0] : vector<32x4xf32> to vector<4xf32>
    %46 = vector.shape_cast %45 : vector<4xf32> to vector<1x4xf32>
    %cst_17 = arith.constant dense<0.000000e+00> : vector<4xf32>
    %47 = vector.multi_reduction <add>, %43, %cst_17 [0] : vector<32x4xf32> to vector<4xf32>
    %48 = vector.shape_cast %47 : vector<4xf32> to vector<1x4xf32>
    %cst_18 = arith.constant dense<0.000000e+00> : vector<4xf32>
    %49 = vector.multi_reduction <add>, %25, %cst_18 [0] : vector<32x4xf32> to vector<4xf32>
    %50 = vector.shape_cast %49 : vector<4xf32> to vector<1x4xf32>
    %cst_19 = arith.constant 0.000000e+00 : f32
    %51 = vector.broadcast %cst_19 : f32 to vector<5x4xf32>
    %52 = tpu.concatenate %46, %48, %50, %51 in 0 : vector<1x4xf32>, vector<1x4xf32>, vector<1x4xf32>, vector<5x4xf32> -> vector<8x4xf32>
    %53 = vector.shape_cast %52 : vector<8x4xf32> to vector<1x8x4xf32>
    %c0_20 = arith.constant 0 : index
    %c0_21 = arith.constant 0 : index
    %c0_22 = arith.constant 0 : index
    %54 = vector.load %arg5[%c0_20, %c0_21, %c0_22] : memref<1x8x4xf32, #tpu.memory_space<vmem>>, vector<1x8x4xf32>
    tpu.vector_store %arg5[%c0_20, %c0_21, %c0_22], %53 {strides = array<i32>} : memref<1x8x4xf32, #tpu.memory_space<vmem>>, vector<1x8x4xf32>,
    return
  }
  func.func @transform_0(%arg0: i32) -> (i32, i32) {
    %c0_i32 = arith.constant 0 : i32
    %c0_i32_0 = arith.constant 0 : i32
    return %arg0, %c0_i32 : i32, i32
  }
  func.func @transform_1(%arg0: i32) -> (i32, i32) {
    %c0_i32 = arith.constant 0 : i32
    %c0_i32_0 = arith.constant 0 : i32
    %c0_i32_1 = arith.constant 0 : i32
    return %c0_i32, %c0_i32_0 : i32, i32
  }
  func.func @transform_2(%arg0: i32) -> (i32, i32) {
    %c0_i32 = arith.constant 0 : i32
    %c0_i32_0 = arith.constant 0 : i32
    return %arg0, %c0_i32 : i32, i32
  }
  func.func @transform_3(%arg0: i32) -> (i32, i32) {
    %c0_i32 = arith.constant 0 : i32
    %c0_i32_0 = arith.constant 0 : i32
    return %arg0, %c0_i32 : i32, i32
  }
  func.func @transform_4(%arg0: i32) -> (i32, i32, i32) {
    %c0_i32 = arith.constant 0 : i32
    %c0_i32_0 = arith.constant 0 : i32
    %c0_i32_1 = arith.constant 0 : i32
    return %arg0, %c0_i32, %c0_i32_0 : i32, i32, i32
  }
}

module attributes {stable_mosaic.version = 11 : i64} {
  func.func @_combine_kernel(%arg0: i32, %arg1: i32, %arg2: memref<32x32xbf16, #tpu.memory_space<vmem>>, %arg3: memref<32x4xf32, #tpu.memory_space<vmem>>, %arg4: memref<32x4xf32, #tpu.memory_space<vmem>>, %arg5: memref<1x8x4xf32, #tpu.memory_space<vmem>>, %arg6: memref<1x128xf32, #tpu.memory_space<vmem>>, %arg7: memref<32x128xf32, #tpu.memory_space<vmem>>, %arg8: memref<32x128xi8, #tpu.memory_space<vmem>>, %arg9: memref<32x8xf32, #tpu.memory_space<vmem>>) attributes {dimension_semantics = [#tpu.dimension_semantics<parallel>, #tpu.dimension_semantics<arbitrary>], iteration_bounds = array<i64: 2, 1>, scalar_prefetch = 0 : i64, scratch_operands = 1 : i64, tpu.core_type = #tpu.core_type<tc>, window_params = [{pipeline_mode = #tpu.pipeline_mode<synchronous>, transform_indices = @transform_0, window_bounds = array<i64: 32, 32>}, {transform_indices = @transform_1, window_bounds = array<i64: 32, 4>}, {transform_indices = @transform_2, window_bounds = array<i64: 32, 4>}, {transform_indices = @transform_3, window_bounds = array<i64: 1, 8, 4>}, {transform_indices = @transform_4, window_bounds = array<i64: 1, 128>}, {transform_indices = @transform_5, window_bounds = array<i64: 32, 128>}, {transform_indices = @transform_6, window_bounds = array<i64: 32, 128>}]} {
    %c0_i32 = arith.constant 0 : i32
    %0 = arith.cmpi eq, %arg1, %c0_i32 : i32
    %1 = arith.extui %0 : i1 to i32
    %c0_i32_0 = arith.constant 0 : i32
    %2 = arith.cmpi ne, %1, %c0_i32_0 : i32
    scf.if %2 {
      %c0_12 = arith.constant 0 : index
      %c0_13 = arith.constant 0 : index
      %35 = vector.load %arg3[%c0_12, %c0_13] : memref<32x4xf32, #tpu.memory_space<vmem>>, vector<32x4xf32>
      %c0_14 = arith.constant 0 : index
      %c0_15 = arith.constant 0 : index
      %36 = vector.load %arg4[%c0_14, %c0_15] : memref<32x4xf32, #tpu.memory_space<vmem>>, vector<32x4xf32>
      %cst_16 = arith.constant dense<0xFF800000> : vector<32xf32>
      %37 = vector.multi_reduction <maximumf>, %35, %cst_16 [1] : vector<32x4xf32> to vector<32xf32>
      %38 = vector.shape_cast %37 : vector<32xf32> to vector<32x1xf32>
      %39 = vector.broadcast %38 : vector<32x1xf32> to vector<32x4xf32>
      %40 = arith.subf %35, %39 : vector<32x4xf32>
      %41 = tpu.iota {dimensions = array<i32: 1>} : vector<32x4xi32>
      %cst_17 = arith.constant dense<0xFF800000> : vector<32xf32>
      %42 = vector.multi_reduction <maximumf>, %40, %cst_17 [1] : vector<32x4xf32> to vector<32xf32>
      %43 = vector.shape_cast %42 : vector<32xf32> to vector<32x1xf32>
      %44 = vector.broadcast %43 : vector<32x1xf32> to vector<32x4xf32>
      %45 = arith.cmpf oeq, %40, %44 : vector<32x4xf32>
      %c4_i32 = arith.constant 4 : i32
      %46 = vector.broadcast %c4_i32 : i32 to vector<32x4xi32>
      %47 = arith.select %45, %41, %46 : vector<32x4xi1>, vector<32x4xi32>
      %cst_18 = arith.constant dense<2147483647> : vector<32xi32>
      %48 = vector.multi_reduction <minsi>, %47, %cst_18 [1] : vector<32x4xi32> to vector<32xi32>
      %49 = vector.shape_cast %48 : vector<32xi32> to vector<32x1xi32>
      %50 = vector.broadcast %49 : vector<32x1xi32> to vector<32x4xi32>
      %51 = arith.cmpi eq, %41, %50 : vector<32x4xi32>
      %52 = arith.extui %51 : vector<32x4xi1> to vector<32x4xi32>
      %53 = arith.sitofp %52 : vector<32x4xi32> to vector<32x4xf32>
      %54 = math.exp %40 : vector<32x4xf32>
      %cst_19 = arith.constant dense<0.000000e+00> : vector<32xf32>
      %55 = vector.multi_reduction <add>, %54, %cst_19 [1] : vector<32x4xf32> to vector<32xf32>
      %56 = vector.shape_cast %55 : vector<32xf32> to vector<32x1xf32>
      %57 = vector.broadcast %56 : vector<32x1xf32> to vector<32x4xf32>
      %58 = arith.divf %54, %57 : vector<32x4xf32>
      %cst_20 = arith.constant 5.000000e-01 : f32
      %59 = vector.broadcast %cst_20 : f32 to vector<32x4xf32>
      %60 = arith.cmpf ogt, %53, %59 : vector<32x4xf32>
      %61 = arith.addf %35, %36 : vector<32x4xf32>
      %cst_21 = arith.constant 0xFF800000 : f32
      %62 = vector.broadcast %cst_21 : f32 to vector<32x4xf32>
      %63 = arith.select %60, %62, %61 : vector<32x4xi1>, vector<32x4xf32>
      %64 = tpu.iota {dimensions = array<i32: 1>} : vector<32x4xi32>
      %cst_22 = arith.constant dense<0xFF800000> : vector<32xf32>
      %65 = vector.multi_reduction <maximumf>, %63, %cst_22 [1] : vector<32x4xf32> to vector<32xf32>
      %66 = vector.shape_cast %65 : vector<32xf32> to vector<32x1xf32>
      %67 = vector.broadcast %66 : vector<32x1xf32> to vector<32x4xf32>
      %68 = arith.cmpf oeq, %63, %67 : vector<32x4xf32>
      %c4_i32_23 = arith.constant 4 : i32
      %69 = vector.broadcast %c4_i32_23 : i32 to vector<32x4xi32>
      %70 = arith.select %68, %64, %69 : vector<32x4xi1>, vector<32x4xi32>
      %cst_24 = arith.constant dense<2147483647> : vector<32xi32>
      %71 = vector.multi_reduction <minsi>, %70, %cst_24 [1] : vector<32x4xi32> to vector<32xi32>
      %72 = vector.shape_cast %71 : vector<32xi32> to vector<32x1xi32>
      %73 = vector.broadcast %72 : vector<32x1xi32> to vector<32x4xi32>
      %74 = arith.cmpi eq, %64, %73 : vector<32x4xi32>
      %75 = arith.extui %74 : vector<32x4xi1> to vector<32x4xi32>
      %76 = arith.sitofp %75 : vector<32x4xi32> to vector<32x4xf32>
      %77 = tpu.iota {dimensions = array<i32: 1>} : vector<32x8xi32>
      %78 = vector.broadcast %49 : vector<32x1xi32> to vector<32x8xi32>
      %79 = arith.cmpi eq, %77, %78 : vector<32x8xi32>
      %c4_i32_25 = arith.constant 4 : i32
      %80 = vector.broadcast %c4_i32_25 : i32 to vector<32x1xi32>
      %81 = arith.addi %72, %80 : vector<32x1xi32>
      %82 = vector.broadcast %81 : vector<32x1xi32> to vector<32x8xi32>
      %83 = arith.cmpi eq, %77, %82 : vector<32x8xi32>
      %84 = arith.ori %79, %83 : vector<32x8xi1>
      %85 = arith.extui %84 : vector<32x8xi1> to vector<32x8xi32>
      %86 = arith.sitofp %85 : vector<32x8xi32> to vector<32x8xf32>
      %87 = arith.truncf %86 : vector<32x8xf32> to vector<32x8xbf16>
      %c0_26 = arith.constant 0 : index
      %c0_27 = arith.constant 0 : index
      %88 = vector.load %arg2[%c0_26, %c0_27] : memref<32x32xbf16, #tpu.memory_space<vmem>>, vector<32x32xbf16>
      %cst_28 = arith.constant dense<0.000000e+00> : vector<32x8xf32>
      %89 = tpu.matmul %88, %87, %cst_28 {dimension_numbers = #tpu.dot_dimension_numbers<[1], [0], [0], [1], [0, 0, 1, 1], [], []>} : vector<32x32xbf16>, vector<32x8xbf16>, vector<32x8xf32> -> vector<32x8xf32>
      %c0_29 = arith.constant 0 : index
      %c0_30 = arith.constant 0 : index
      %c0_31 = arith.constant 0 : index
      %90 = vector.load %arg5[%c0_29, %c0_30, %c0_31] : memref<1x8x4xf32, #tpu.memory_space<vmem>>, vector<1x8x4xf32>
      %91 = vector.shape_cast %90 : vector<1x8x4xf32> to vector<8x4xf32>
      %92 = vector.extract_strided_slice %89 {offsets = [0, 0], sizes = [32, 4], strides = [1, 1]} : vector<32x8xf32> to vector<32x4xf32>
      %cst_32 = arith.constant 1.000000e+00 : f32
      %93 = vector.broadcast %cst_32 : f32 to vector<32x4xf32>
      %94 = arith.subf %92, %93 : vector<32x4xf32>
      %95 = vector.extract_strided_slice %91 {offsets = [0, 0], sizes = [1, 4], strides = [1, 1]} : vector<8x4xf32> to vector<1x4xf32>
      %96 = vector.broadcast %95 : vector<1x4xf32> to vector<32x4xf32>
      %97 = arith.addf %94, %96 : vector<32x4xf32>
      %98 = vector.extract_strided_slice %89 {offsets = [0, 4], sizes = [32, 4], strides = [1, 1]} : vector<32x8xf32> to vector<32x4xf32>
      %cst_33 = arith.constant 1.000000e+00 : f32
      %99 = vector.broadcast %cst_33 : f32 to vector<32x4xf32>
      %100 = arith.subf %98, %99 : vector<32x4xf32>
      %101 = vector.extract_strided_slice %91 {offsets = [1, 0], sizes = [1, 4], strides = [1, 1]} : vector<8x4xf32> to vector<1x4xf32>
      %102 = vector.broadcast %101 : vector<1x4xf32> to vector<32x4xf32>
      %103 = arith.addf %100, %102 : vector<32x4xf32>
      %cst_34 = arith.constant 3.200000e+01 : f32
      %104 = vector.broadcast %cst_34 : f32 to vector<32x4xf32>
      %105 = arith.cmpf olt, %97, %104 : vector<32x4xf32>
      %106 = arith.extui %105 : vector<32x4xi1> to vector<32x4xi32>
      %107 = arith.sitofp %106 : vector<32x4xi32> to vector<32x4xf32>
      %108 = arith.mulf %53, %107 : vector<32x4xf32>
      %cst_35 = arith.constant 3.200000e+01 : f32
      %109 = vector.broadcast %cst_35 : f32 to vector<32x4xf32>
      %110 = arith.cmpf olt, %103, %109 : vector<32x4xf32>
      %111 = arith.extui %110 : vector<32x4xi1> to vector<32x4xi32>
      %112 = arith.sitofp %111 : vector<32x4xi32> to vector<32x4xf32>
      %113 = arith.mulf %76, %112 : vector<32x4xf32>
      %114 = arith.mulf %97, %108 : vector<32x4xf32>
      %cst_36 = arith.constant dense<0.000000e+00> : vector<32xf32>
      %115 = vector.multi_reduction <add>, %114, %cst_36 [1] : vector<32x4xf32> to vector<32xf32>
      %116 = vector.shape_cast %115 : vector<32xf32> to vector<32x1xf32>
      %117 = arith.mulf %103, %113 : vector<32x4xf32>
      %cst_37 = arith.constant dense<0.000000e+00> : vector<32xf32>
      %118 = vector.multi_reduction <add>, %117, %cst_37 [1] : vector<32x4xf32> to vector<32xf32>
      %119 = vector.shape_cast %118 : vector<32xf32> to vector<32x1xf32>
      %120 = arith.mulf %58, %108 : vector<32x4xf32>
      %cst_38 = arith.constant dense<0.000000e+00> : vector<32xf32>
      %121 = vector.multi_reduction <add>, %120, %cst_38 [1] : vector<32x4xf32> to vector<32xf32>
      %122 = vector.shape_cast %121 : vector<32xf32> to vector<32x1xf32>
      %123 = arith.mulf %58, %113 : vector<32x4xf32>
      %cst_39 = arith.constant dense<0.000000e+00> : vector<32xf32>
      %124 = vector.multi_reduction <add>, %123, %cst_39 [1] : vector<32x4xf32> to vector<32xf32>
      %125 = vector.shape_cast %124 : vector<32xf32> to vector<32x1xf32>
      %126 = arith.addf %122, %125 : vector<32x1xf32>
      %cst_40 = arith.constant 1.1920929E-7 : f32
      %127 = vector.broadcast %cst_40 : f32 to vector<32x1xf32>
      %128 = arith.maximumf %126, %127 : vector<32x1xf32>
      %129 = arith.divf %122, %128 : vector<32x1xf32>
      %130 = arith.divf %125, %128 : vector<32x1xf32>
      %131 = arith.sitofp %49 : vector<32x1xi32> to vector<32x1xf32>
      %cst_41 = arith.constant 3.200000e+01 : f32
      %132 = vector.broadcast %cst_41 : f32 to vector<32x1xf32>
      %133 = arith.mulf %131, %132 : vector<32x1xf32>
      %134 = arith.addf %133, %116 : vector<32x1xf32>
      %135 = arith.sitofp %72 : vector<32x1xi32> to vector<32x1xf32>
      %cst_42 = arith.constant 3.200000e+01 : f32
      %136 = vector.broadcast %cst_42 : f32 to vector<32x1xf32>
      %137 = arith.mulf %135, %136 : vector<32x1xf32>
      %138 = arith.addf %137, %119 : vector<32x1xf32>
      %cst_43 = arith.constant 0.000000e+00 : f32
      %139 = vector.broadcast %cst_43 : f32 to vector<32x4xf32>
      %140 = tpu.concatenate %134, %138, %129, %130, %139 in 1 : vector<32x1xf32>, vector<32x1xf32>, vector<32x1xf32>, vector<32x1xf32>, vector<32x4xf32> -> vector<32x8xf32>
      %c0_44 = arith.constant 0 : index
      %c0_45 = arith.constant 0 : index
      %141 = vector.load %arg9[%c0_44, %c0_45] : memref<32x8xf32, #tpu.memory_space<vmem>>, vector<32x8xf32>
      tpu.vector_store %arg9[%c0_44, %c0_45], %140 {strides = array<i32>} : memref<32x8xf32, #tpu.memory_space<vmem>>, vector<32x8xf32>,
    } else {
    }
    %c0 = arith.constant 0 : index
    %c0_1 = arith.constant 0 : index
    %3 = vector.load %arg6[%c0, %c0_1] : memref<1x128xf32, #tpu.memory_space<vmem>>, vector<1x128xf32>
    %c0_2 = arith.constant 0 : index
    %c0_3 = arith.constant 0 : index
    %4 = vector.load %arg9[%c0_2, %c0_3] : memref<32x8xf32, #tpu.memory_space<vmem>>, vector<32x1xf32>
    %c0_4 = arith.constant 0 : index
    %c1 = arith.constant 1 : index
    %5 = vector.load %arg9[%c0_4, %c1] : memref<32x8xf32, #tpu.memory_space<vmem>>, vector<32x1xf32>
    %c0_5 = arith.constant 0 : index
    %c2 = arith.constant 2 : index
    %6 = vector.load %arg9[%c0_5, %c2] : memref<32x8xf32, #tpu.memory_space<vmem>>, vector<32x1xf32>
    %c0_6 = arith.constant 0 : index
    %c3 = arith.constant 3 : index
    %7 = vector.load %arg9[%c0_6, %c3] : memref<32x8xf32, #tpu.memory_space<vmem>>, vector<32x1xf32>
    %8 = vector.broadcast %3 : vector<1x128xf32> to vector<32x128xf32>
    %9 = vector.broadcast %4 : vector<32x1xf32> to vector<32x128xf32>
    %10 = arith.cmpf oeq, %8, %9 : vector<32x128xf32>
    %11 = vector.broadcast %3 : vector<1x128xf32> to vector<32x128xf32>
    %12 = vector.broadcast %5 : vector<32x1xf32> to vector<32x128xf32>
    %13 = arith.cmpf oeq, %11, %12 : vector<32x128xf32>
    %14 = arith.extui %10 : vector<32x128xi1> to vector<32x128xi32>
    %15 = arith.sitofp %14 : vector<32x128xi32> to vector<32x128xf32>
    %16 = vector.broadcast %6 : vector<32x1xf32> to vector<32x128xf32>
    %17 = arith.mulf %16, %15 : vector<32x128xf32>
    %18 = arith.extui %13 : vector<32x128xi1> to vector<32x128xi32>
    %19 = arith.sitofp %18 : vector<32x128xi32> to vector<32x128xf32>
    %20 = vector.broadcast %7 : vector<32x1xf32> to vector<32x128xf32>
    %21 = arith.mulf %20, %19 : vector<32x128xf32>
    %22 = arith.addf %17, %21 : vector<32x128xf32>
    %c0_7 = arith.constant 0 : index
    %c0_8 = arith.constant 0 : index
    %23 = vector.load %arg7[%c0_7, %c0_8] : memref<32x128xf32, #tpu.memory_space<vmem>>, vector<32x128xf32>
    tpu.vector_store %arg7[%c0_7, %c0_8], %22 {strides = array<i32>} : memref<32x128xf32, #tpu.memory_space<vmem>>, vector<32x128xf32>,
    %cst = arith.constant 0.000000e+00 : f32
    %24 = vector.broadcast %cst : f32 to vector<32x1xf32>
    %25 = arith.cmpf ogt, %6, %24 : vector<32x1xf32>
    %26 = vector.broadcast %25 : vector<32x1xi1> to vector<32x128xi1>
    %27 = arith.andi %10, %26 : vector<32x128xi1>
    %cst_9 = arith.constant 0.000000e+00 : f32
    %28 = vector.broadcast %cst_9 : f32 to vector<32x1xf32>
    %29 = arith.cmpf ogt, %7, %28 : vector<32x1xf32>
    %30 = vector.broadcast %29 : vector<32x1xi1> to vector<32x128xi1>
    %31 = arith.andi %13, %30 : vector<32x128xi1>
    %32 = arith.ori %27, %31 : vector<32x128xi1>
    %33 = arith.extui %32 : vector<32x128xi1> to vector<32x128xi8>
    %c0_10 = arith.constant 0 : index
    %c0_11 = arith.constant 0 : index
    %34 = vector.load %arg8[%c0_10, %c0_11] : memref<32x128xi8, #tpu.memory_space<vmem>>, vector<32x128xi8>
    tpu.vector_store %arg8[%c0_10, %c0_11], %33 {strides = array<i32>} : memref<32x128xi8, #tpu.memory_space<vmem>>, vector<32x128xi8>,
    return
  }
  func.func @transform_0(%arg0: i32, %arg1: i32) -> (i32, i32) {
    %c0_i32 = arith.constant 0 : i32
    %c0_i32_0 = arith.constant 0 : i32
    %c0_i32_1 = arith.constant 0 : i32
    return %c0_i32, %c0_i32_0 : i32, i32
  }
  func.func @transform_1(%arg0: i32, %arg1: i32) -> (i32, i32) {
    %c0_i32 = arith.constant 0 : i32
    %c0_i32_0 = arith.constant 0 : i32
    return %arg0, %c0_i32 : i32, i32
  }
  func.func @transform_2(%arg0: i32, %arg1: i32) -> (i32, i32) {
    %c0_i32 = arith.constant 0 : i32
    %c0_i32_0 = arith.constant 0 : i32
    return %arg0, %c0_i32 : i32, i32
  }
  func.func @transform_3(%arg0: i32, %arg1: i32) -> (i32, i32, i32) {
    %c0_i32 = arith.constant 0 : i32
    %c0_i32_0 = arith.constant 0 : i32
    %c0_i32_1 = arith.constant 0 : i32
    return %arg0, %c0_i32, %c0_i32_0 : i32, i32, i32
  }
  func.func @transform_4(%arg0: i32, %arg1: i32) -> (i32, i32) {
    %c0_i32 = arith.constant 0 : i32
    %c0_i32_0 = arith.constant 0 : i32
    return %c0_i32, %arg1 : i32, i32
  }
  func.func @transform_5(%arg0: i32, %arg1: i32) -> (i32, i32) {
    %c0_i32 = arith.constant 0 : i32
    return %arg0, %arg1 : i32, i32
  }
  func.func @transform_6(%arg0: i32, %arg1: i32) -> (i32, i32) {
    %c0_i32 = arith.constant 0 : i32
    return %arg0, %arg1 : i32, i32
  }
}

</mosaic_0001>

<llo_original>
// kernel: top2gate.2
$region0: #{top2gate.2}
  #allocation0 [shape = 'u32[]', space=smem, size = 0x4, offset = 0x4, fixed_abs, tag = 'smem constant byte address 0x4 - core index']
  #allocation1 [shape = 'u32[144,128]{1,0:T(1,128)}', space=vmem, size = 0x12000, scoped, tag = 'internal scratch']
  %s0 = inlined_call_operand.vmem [shape: bf16[64,32], index: 0, kind: input, shape index: {}]
  %s1 = inlined_call_operand.vmem [shape: bf16[32,4], index: 1, kind: input, shape index: {}]
  %s2 = inlined_call_operand.vmem [shape: f32[64,4], index: 2, kind: input, shape index: {}]
  %s3 = inlined_call_operand.vmem [shape: f32[64,4], index: 3, kind: output, shape index: {0}]
  %s4 = inlined_call_operand.vmem [shape: f32[2,8,4], index: 4, kind: output, shape index: {1}]
  %5 = xla_tuple %s3, %s4
  %s6 = sld [smem:[#allocation0]]
  $region53: #{top2gate.2} parent=0
    _
  %s8 = ssub.s32 1, %s6
  %s9 = scalar_select 0, %s8, %s6
  loop: start=0, step=1, limit=4
  $region2: #{top2gate.2} parent=0 // loop_pre_header
    _
  $region3: #{top2gate.2} parent=0 // loop_header
    %s11 = sphi 0, %s15
    %p12 = scmp.ge.s32.totalorder %s11, 4
    %s21 = sphi 0, %s23
    %s24 = sphi 0, %s21
    %s25 = sphi 0, %s24
    %s41 = sphi 0, %s25
    %s45 = sphi 0, %s45
    %s47 = sphi 0, %s45
    %s48 = sphi 0, %s47
    %s62 = sphi 0, %s48
    %s68 = sphi 0, %s70
    %s71 = sphi 0, %s68
    %s72 = sphi 0, %s71
    %s88 = sphi 0, %s72
    %s94 = sphi 0, %s96
    %s97 = sphi 0, %s94
    %s98 = sphi 0, %s97
    %s114 = sphi 0, %s98
    %s120 = sphi 0, %s122
    %s123 = sphi 0, %s120
    %s124 = sphi 0, %s123
    %s140 = sphi 0, %s124
  $region4: #{top2gate.2} parent=0 // loop_header_branch
    %14 = sbr.rel (%p12) target = $region8
  $region5: #{top2gate.2} parent=0 // loop_body
    %s16 = ssub.s32 %s11, 1
    %s17 = ssub.s32 %s11, 2
    %s18 = sadd.s32 %s11, 1
    %s19 = ssub.s32 %s11, %s18
    %p20 = scmp.eq.s32.totalorder %s19, 0
    %s22 = sadd.s32 %s21, 1
    %s23 = scalar_select %p20, %s21, %s22
    %p26 = pneg %p20
    %p27 = scmp.eq.s32.totalorder %s11, 1
    %p28 = por %p26, %p27
    %p29 = scmp.ne.s32.totalorder %s21, %s24
    %p30 = scmp.eq.s32.totalorder %s11, 0
    %p31 = por %p29, %p30
    %p32 = scmp.ne.s32.totalorder %s21, %s24
    %p33 = scmp.eq.s32.totalorder %s16, 1
    %p34 = por %p32, %p33
    %p35 = scmp.ne.s32.totalorder %s24, %s25
    %p36 = scmp.eq.s32.totalorder %s16, 0
    %p37 = por %p35, %p36
    %p38 = scmp.ne.s32.totalorder %s24, %s25
    %p39 = scmp.eq.s32.totalorder %s17, 1
    %p40 = por %p38, %p39
    %p42 = scmp.ne.s32.totalorder %s25, %s41
    %p43 = scmp.eq.s32.totalorder %s17, 0
    %p44 = por %p42, %p43
    %s46 = sadd.s32 %s45, 1
    %p49 = scmp.eq.s32.totalorder %s11, 1
    %p50 = scmp.ne.s32.totalorder %s45, %s47
    %p51 = scmp.eq.s32.totalorder %s11, 0
    %p52 = por %p50, %p51
    %p53 = scmp.ne.s32.totalorder %s45, %s47
    %p54 = scmp.eq.s32.totalorder %s16, 1
    %p55 = por %p53, %p54
    %p56 = scmp.ne.s32.totalorder %s47, %s48
    %p57 = scmp.eq.s32.totalorder %s16, 0
    %p58 = por %p56, %p57
    %p59 = scmp.ne.s32.totalorder %s47, %s48
    %p60 = scmp.eq.s32.totalorder %s17, 1
    %p61 = por %p59, %p60
    %p63 = scmp.ne.s32.totalorder %s48, %s62
    %p64 = scmp.eq.s32.totalorder %s17, 0
    %p65 = por %p63, %p64
    %s66 = ssub.s32 %s11, %s18
    %p67 = scmp.eq.s32.totalorder %s66, 0
    %s69 = sadd.s32 %s68, 1
    %s70 = scalar_select %p67, %s68, %s69
    %p73 = pneg %p67
    %p74 = scmp.eq.s32.totalorder %s11, 1
    %p75 = por %p73, %p74
    %p76 = scmp.ne.s32.totalorder %s68, %s71
    %p77 = scmp.eq.s32.totalorder %s11, 0
    %p78 = por %p76, %p77
    %p79 = scmp.ne.s32.totalorder %s68, %s71
    %p80 = scmp.eq.s32.totalorder %s16, 1
    %p81 = por %p79, %p80
    %p82 = scmp.ne.s32.totalorder %s71, %s72
    %p83 = scmp.eq.s32.totalorder %s16, 0
    %p84 = por %p82, %p83
    %p85 = scmp.ne.s32.totalorder %s71, %s72
    %p86 = scmp.eq.s32.totalorder %s17, 1
    %p87 = por %p85, %p86
    %p89 = scmp.ne.s32.totalorder %s72, %s88
    %p90 = scmp.eq.s32.totalorder %s17, 0
    %p91 = por %p89, %p90
    %s92 = ssub.s32 %s11, %s18
    %p93 = scmp.eq.s32.totalorder %s92, 0
    %s95 = sadd.s32 %s94, 1
    %s96 = scalar_select %p93, %s94, %s95
    %p99 = pneg %p93
    %p100 = scmp.eq.s32.totalorder %s11, 1
    %p101 = por %p99, %p100
    %p102 = scmp.ne.s32.totalorder %s94, %s97
    %p103 = scmp.eq.s32.totalorder %s11, 0
    %p104 = por %p102, %p103
    %p105 = scmp.ne.s32.totalorder %s94, %s97
    %p106 = scmp.eq.s32.totalorder %s16, 1
    %p107 = por %p105, %p106
    %p108 = scmp.ne.s32.totalorder %s97, %s98
    %p109 = scmp.eq.s32.totalorder %s16, 0
    %p110 = por %p108, %p109
    %p111 = scmp.ne.s32.totalorder %s97, %s98
    %p112 = scmp.eq.s32.totalorder %s17, 1
    %p113 = por %p111, %p112
    %p115 = scmp.ne.s32.totalorder %s98, %s114
    %p116 = scmp.eq.s32.totalorder %s17, 0
    %p117 = por %p115, %p116
    %s118 = ssub.s32 %s11, %s18
    %p119 = scmp.eq.s32.totalorder %s118, 0
    %s121 = sadd.s32 %s120, 1
    %s122 = scalar_select %p119, %s120, %s121
    %p125 = pneg %p119
    %p126 = scmp.eq.s32.totalorder %s11, 1
    %p127 = por %p125, %p126
    %p128 = scmp.ne.s32.totalorder %s120, %s123
    %p129 = scmp.eq.s32.totalorder %s11, 0
    %p130 = por %p128, %p129
    %p131 = scmp.ne.s32.totalorder %s120, %s123
    %p132 = scmp.eq.s32.totalorder %s16, 1
    %p133 = por %p131, %p132
    %p134 = scmp.ne.s32.totalorder %s123, %s124
    %p135 = scmp.eq.s32.totalorder %s16, 0
    %p136 = por %p134, %p135
    %p137 = scmp.ne.s32.totalorder %s123, %s124
    %p138 = scmp.eq.s32.totalorder %s17, 1
    %p139 = por %p137, %p138
    %p141 = scmp.ne.s32.totalorder %s124, %s140
    %p142 = scmp.eq.s32.totalorder %s17, 0
    %p143 = por %p141, %p142
    %p144 = scmp.le.s32.totalorder 1, %s11
    %p145 = scmp.lt.s32.totalorder %s11, 3
    %p146 = pnand %p144, %p145
    %p147 = pneg %p146
    // Predicated region
    $region9: #{top2gate.2} parent=5 // pred_check
      _
    $region10: #{top2gate.2} parent=5 // pred_check_branch
      %149 = sbr.rel (%p146) target = $region12
    $region11: #{top2gate.2} parent=5 // pred_region
      %s150 = ssub.s32 %s11, 1
      // Predicated region
      $region13: #{top2gate.2} parent=11 // pred_check
        %p151 = pneg %p58
      $region14: #{top2gate.2} parent=11 // pred_check_branch
        %153 = sbr.rel (%p151) target = $region16
      $region15: #{top2gate.2} parent=11 // pred_region
        _
      $region16: #{top2gate.2} parent=11 // pred_fallthru
        _
    $region12: #{top2gate.2} parent=5 // pred_fallthru
      _
    %p154 = scmp.lt.s32.totalorder %s11, 2
    // Predicated region
    $region17: #{top2gate.2} parent=5 // pred_check
      %p155 = pneg %p154
    $region18: #{top2gate.2} parent=5 // pred_check_branch
      %157 = sbr.rel (%p155) target = $region20
    $region19: #{top2gate.2} parent=5 // pred_region
      // Predicated region
      $region21: #{top2gate.2} parent=19 // pred_check
        %p158 = pneg %p31
      $region22: #{top2gate.2} parent=19 // pred_check_branch
        %160 = sbr.rel (%p158) target = $region24
      $region23: #{top2gate.2} parent=19 // pred_region
        %s161 = smul.u32 4, %s11
        %p162 = scmp.lt.s32.totalorder %s161, 7
        %s163 = scalar_select %p162, %s161, 7
        %s164 = smul.addr %s163, 4
        %s165 = scalar_lea.vmem %s0, %s164
        %s166 = smul.u32 4, %s11
      $region24: #{top2gate.2} parent=19 // pred_fallthru
        _
      // Predicated region
      $region25: #{top2gate.2} parent=19 // pred_check
        %p167 = pneg %p78
      $region26: #{top2gate.2} parent=19 // pred_check_branch
        %169 = sbr.rel (%p167) target = $region28
      $region27: #{top2gate.2} parent=19 // pred_region
        %s170 = smul.u32 4, %s11
        %p171 = scmp.lt.s32.totalorder %s170, 7
        %s172 = scalar_select %p171, %s170, 7
        %s173 = smul.addr %s172, 8
        %s174 = scalar_lea.vmem %s2, %s173
        %s175 = smul.u32 4, %s11
      $region28: #{top2gate.2} parent=19 // pred_fallthru
        _
    $region20: #{top2gate.2} parent=5 // pred_fallthru
      _
    %p176 = scmp.le.s32.totalorder 1, %s11
    %p177 = scmp.lt.s32.totalorder %s11, 3
    %p178 = pnand %p176, %p177
    %p179 = pneg %p178
    // Predicated region
    $region29: #{top2gate.2} parent=5 // pred_check
      _
    $region30: #{top2gate.2} parent=5 // pred_check_branch
      %181 = sbr.rel (%p178) target = $region32
    $region31: #{top2gate.2} parent=5 // pred_region
      %s182 = ssub.s32 %s11, 1
      %s183 = smul.u32 4, %s16
      %p184 = scmp.lt.s32.totalorder %s183, 7
      %s185 = scalar_select %p184, %s183, 7
      %s186 = smul.addr %s185, 4
      %s187 = scalar_lea.vmem %s0, %s186
      %p188 = pneg %p37
      %p189 = pneg %p34
      %p190 = pneg %p58
      %p191 = pneg %p55
      %s192 = smul.u32 4, %s16
      %p193 = scmp.lt.s32.totalorder %s192, 7
      %s194 = scalar_select %p193, %s192, 7
      %s195 = smul.addr %s194, 8
      %s196 = scalar_lea.vmem %s2, %s195
      %p197 = pneg %p84
      %p198 = pneg %p81
      %p199 = pneg %p110
      %p200 = pneg %p107
      %s201 = smul.u32 4, %s16
      %p202 = scmp.lt.s32.totalorder %s201, 7
      %s203 = scalar_select %p202, %s201, 7
      %s204 = smul.addr %s203, 8
      %s205 = scalar_lea.vmem %s3, %s204
      %p206 = pneg %p136
      %p207 = pneg %p133
      %p208 = scmp.lt.s32.totalorder %s16, 1
      %s209 = scalar_select %p208, %s16, 1
      %s210 = smul.addr %s209, 8
      %s211 = scalar_lea.vmem %s4, %s210
      %s212 = smul.u32 4, %s16
      %p213 = scmp.lt.s32.totalorder %s212, 7
      %s214 = scalar_select %p213, %s212, 7
      %s215 = smul.addr %s214, 4
      %s216 = scalar_lea.vmem %s0, %s215
      %s217 = smul.u32 4, %s16
      %s218 = smul.u32 4, %s16
      %p219 = scmp.lt.s32.totalorder %s218, 7
      %s220 = scalar_select %p219, %s218, 7
      %s221 = smul.addr %s220, 8
      %s222 = scalar_lea.vmem %s2, %s221
      %s223 = smul.u32 4, %s16
      %s224 = smul.u32 4, %s16
      %p225 = scmp.lt.s32.totalorder %s224, 7
      %s226 = scalar_select %p225, %s224, 7
      %s227 = smul.addr %s226, 8
      %s228 = scalar_lea.vmem %s3, %s227
      %s229 = smul.u32 4, %s16
      %p230 = scmp.lt.s32.totalorder %s16, 1
      %s231 = scalar_select %p230, %s16, 1
      %s232 = smul.addr %s231, 8
      %s233 = scalar_lea.vmem %s4, %s232
      %v235 = vld [vmem:[%s216] sm:$0xf]
      %v236 = vld [vmem:[%s216 + $0x4] sm:$0xf]
      %v237 = vld [vmem:[%s216 + $0x8] sm:$0xf]
      %v238 = vld [vmem:[%s216 + $0xc] sm:$0xf]
      %v239 = vld [vmem:[%s1] sm:$0xf]
      %v240 = vld [vmem:[%s1 + $0x4] sm:$0xf]
      %v241 = vld [vmem:[%s1 + $0x8] sm:$0xf]
      %v242 = vld [vmem:[%s1 + $0xc] sm:$0xf]
      %v247 = vunpack.c.l.b16 %v235
      %v248 = vunpack.c.l.b16 %v236
      %v249 = vunpack.c.l.b16 %v237
      %v250 = vunpack.c.l.b16 %v238
      %v251 = vpack.c.b16 %v248, %v247
      %v252 = vpack.c.b16 %v250, %v249
      %v257 = vunpack.c.l.b16 %v239
      %v258 = vunpack.c.l.b16 %v240
      %v259 = vunpack.c.l.b16 %v241
      %v260 = vunpack.c.l.b16 %v242
      %v261 = vpack.c.b16 %v258, %v257
      %v262 = vpack.c.b16 %v260, %v259
      %vm265 = vcmask 261120
      %v267 = vsel %vm265, %v251, 0
      %v270 = vsel %vm265, %v252, 0
      %272 = vmatprep.subr.bf16.mxu0 0
      %273 = vmatpush1.bf16.msra.mxu0 %v261
      %274 = vmatprep.subr.bf16.mxu0 0
      %275 = vmatpush1.bf16.msra.mxu0 %v262
      %276 = vmatprep.subr.bf16.mxu0 0
      %277 = vmatpush1.bf16.msra.mxu0 0
      %278 = vmatprep.subr.bf16.mxu0 0
      %279 = vmatpush1.bf16.msra.mxu0 0
      %280 = vmatprep.subr.bf16.mxu0 0
      %281 = vmatpush1.bf16.msra.mxu0 0
      %282 = vmatprep.subr.bf16.mxu0 0
      %283 = vmatpush1.bf16.msra.mxu0 0
      %284 = vmatprep.subr.bf16.mxu0 0
      %285 = vmatpush1.bf16.msra.mxu0 0
      %286 = vmatprep.subr.bf16.mxu0 0
      %287 = vmatpush1.bf16.msra.mxu0 0
      %288 = vmatprep.subr.bf16.mxu0 0
      %289 = vmatpush1.bf16.msra.mxu0 0
      %290 = vmatprep.subr.bf16.mxu0 0
      %291 = vmatpush1.bf16.msra.mxu0 0
      %292 = vmatprep.subr.bf16.mxu0 0
      %293 = vmatpush1.bf16.msra.mxu0 0
      %294 = vmatprep.subr.bf16.mxu0 0
      %295 = vmatpush1.bf16.msra.mxu0 0
      %296 = vmatprep.subr.bf16.mxu0 0
      %297 = vmatpush1.bf16.msra.mxu0 0
      %298 = vmatprep.subr.bf16.mxu0 0
      %299 = vmatpush1.bf16.msra.mxu0 0
      %300 = vmatprep.subr.bf16.mxu0 0
      %301 = vmatpush1.bf16.msra.mxu0 0
      %302 = vmatprep.subr.bf16.mxu0 0
      %303 = vmatpush1.bf16.msra.mxu0 0
      %304 = vmatprep.mubr.bf16.mxu0 0
      %305 = vmatmul.mubr.bf16.gmra.mrb[0].mxu0 %v267
      %v306 = vpop.f32.mrb[0].mxu0
      %v307 = vadd.f32 0.0, %v306
      %v308 = vpop.f32.mrb[0].mxu0
      %v309 = vpop.f32.mrb[0].mxu0
      %v310 = vadd.f32 0.0, %v309
      %v311 = vpop.f32.mrb[0].mxu0
      %312 = vmatprep.mubr.bf16.mxu0 0
      %313 = vmatmul.mubr.bf16.gmra.mrb[0].mxu0 %v270
      %v314 = vpop.f32.mrb[0].mxu0
      %v315 = vadd.f32 0.0, %v314
      %v316 = vpop.f32.mrb[0].mxu0
      %v317 = vpop.f32.mrb[0].mxu0
      %v318 = vadd.f32 0.0, %v317
      %v319 = vpop.f32.mrb[0].mxu0
      %320 = vdwg.mxu0
      %v321 = vld [vmem:[%s222] sm:$0xff]
      %v322 = vld [vmem:[%s222 + $0x8] sm:$0xff]
      %v323 = vld [vmem:[%s222 + $0x10] sm:$0xff]
      %v324 = vld [vmem:[%s222 + $0x18] sm:$0xff]
      %vm325 = vcmask 31744
      %v326 = vsel %vm325, %v307, -inf
      %327 = vmax.xlane.f32.xlu0 %v326
      %v328 = vpop.xlane.xlu0 %327
      %v329 = vsel %vm325, %v310, -inf
      %330 = vmax.xlane.f32.xlu0 %v329
      %v331 = vpop.xlane.xlu0 %330
      %v332 = vsel %vm325, %v315, -inf
      %333 = vmax.xlane.f32.xlu0 %v332
      %v334 = vpop.xlane.xlu0 %333
      %v335 = vsel %vm325, %v318, -inf
      %336 = vmax.xlane.f32.xlu0 %v335
      %v337 = vpop.xlane.xlu0 %336
      %v338 = vsub.f32 %v307, %v328
      %v339 = vsub.f32 %v310, %v331
      %v340 = vsub.f32 %v315, %v334
      %v341 = vsub.f32 %v318, %v337
      %v342 = vlaneseq
      %v343 = vand.u32 %v342, 127
      %v344 = vsel %vm325, %v338, -inf
      %345 = vmax.xlane.f32.xlu0 %v344
      %v346 = vpop.xlane.xlu0 %345
      %v347 = vsel %vm325, %v339, -inf
      %348 = vmax.xlane.f32.xlu0 %v347
      %v349 = vpop.xlane.xlu0 %348
      %v350 = vsel %vm325, %v340, -inf
      %351 = vmax.xlane.f32.xlu0 %v350
      %v352 = vpop.xlane.xlu0 %351
      %v353 = vsel %vm325, %v341, -inf
      %354 = vmax.xlane.f32.xlu0 %v353
      %v355 = vpop.xlane.xlu0 %354
      %vm356 = vcmp.eq.f32.partialorder %v338, %v346
      %vm357 = vcmp.eq.f32.partialorder %v339, %v349
      %vm358 = vcmp.eq.f32.partialorder %v340, %v352
      %vm359 = vcmp.eq.f32.partialorder %v341, %v355
      %v360 = vsel %vm356, %v343, 4
      %v361 = vsel %vm357, %v343, 4
      %v362 = vsel %vm358, %v343, 4
      %v363 = vsel %vm359, %v343, 4
      %v364 = vsel %vm325, %v360, 2147483647
      %v365 = vand.u32 %v364, 65535
      %v366 = vshra.s32 %v364, 16
      %v367 = vcvt.s32.f32 %v365
      %v368 = vcvt.s32.f32 %v366
      %369 = vmin.xlane.f32.xlu0 %v368
      %v370 = vpop.xlane.xlu0 %369
      %vm371 = vcmp.eq.f32.partialorder %v368, %v370
      %v372 = vsel %vm371, %v367, inf
      %373 = vmin.xlane.f32.xlu0 %v372
      %v374 = vpop.xlane.xlu0 %373
      %v375 = vcvt.f32.s32 %v374
      %v376 = vcvt.f32.s32 %v370
      %v377 = vshll.u32 %v376, 16
      %v378 = vadd.s32 %v377, %v375
      %v379 = vsel %vm325, %v361, 2147483647
      %v380 = vand.u32 %v379, 65535
      %v381 = vshra.s32 %v379, 16
      %v382 = vcvt.s32.f32 %v380
      %v383 = vcvt.s32.f32 %v381
      %384 = vmin.xlane.f32.xlu0 %v383
      %v385 = vpop.xlane.xlu0 %384
      %vm386 = vcmp.eq.f32.partialorder %v383, %v385
      %v387 = vsel %vm386, %v382, inf
      %388 = vmin.xlane.f32.xlu0 %v387
      %v389 = vpop.xlane.xlu0 %388
      %v390 = vcvt.f32.s32 %v389
      %v391 = vcvt.f32.s32 %v385
      %v392 = vshll.u32 %v391, 16
      %v393 = vadd.s32 %v392, %v390
      %v394 = vsel %vm325, %v362, 2147483647
      %v395 = vand.u32 %v394, 65535
      %v396 = vshra.s32 %v394, 16
      %v397 = vcvt.s32.f32 %v395
      %v398 = vcvt.s32.f32 %v396
      %399 = vmin.xlane.f32.xlu0 %v398
      %v400 = vpop.xlane.xlu0 %399
      %vm401 = vcmp.eq.f32.partialorder %v398, %v400
      %v402 = vsel %vm401, %v397, inf
      %403 = vmin.xlane.f32.xlu0 %v402
      %v404 = vpop.xlane.xlu0 %403
      %v405 = vcvt.f32.s32 %v404
      %v406 = vcvt.f32.s32 %v400
      %v407 = vshll.u32 %v406, 16
      %v408 = vadd.s32 %v407, %v405
      %v409 = vsel %vm325, %v363, 2147483647
      %v410 = vand.u32 %v409, 65535
      %v411 = vshra.s32 %v409, 16
      %v412 = vcvt.s32.f32 %v410
      %v413 = vcvt.s32.f32 %v411
      %414 = vmin.xlane.f32.xlu0 %v413
      %v415 = vpop.xlane.xlu0 %414
      %vm416 = vcmp.eq.f32.partialorder %v413, %v415
      %v417 = vsel %vm416, %v412, inf
      %418 = vmin.xlane.f32.xlu0 %v417
      %v419 = vpop.xlane.xlu0 %418
      %v420 = vcvt.f32.s32 %v419
      %v421 = vcvt.f32.s32 %v415
      %v422 = vshll.u32 %v421, 16
      %v423 = vadd.s32 %v422, %v420
      %vm424 = vcmp.eq.s32.totalorder %v343, %v378
      %vm425 = vcmp.eq.s32.totalorder %v343, %v393
      %vm426 = vcmp.eq.s32.totalorder %v343, %v408
      %vm427 = vcmp.eq.s32.totalorder %v343, %v423
      %v428 = vsel %vm424, 1, 0
      %v429 = vsel %vm425, 1, 0
      %v430 = vsel %vm426, 1, 0
      %v431 = vsel %vm427, 1, 0
      %v432 = vcvt.s32.f32 %v428
      %v433 = vcvt.s32.f32 %v429
      %v434 = vcvt.s32.f32 %v430
      %v435 = vcvt.s32.f32 %v431
      %v436 = vmul.f32 %v338, 1.442695
      %v437 = vpow.pop %v436
      %v438 = vmul.f32 %v339, 1.442695
      %v439 = vpow.pop %v438
      %v440 = vmul.f32 %v340, 1.442695
      %v441 = vpow.pop %v440
      %v442 = vmul.f32 %v341, 1.442695
      %v443 = vpow.pop %v442
      %v444 = vsel %vm325, %v437, 0.0
      %445 = vadd.xlane.f32.xlu0 %v444
      %v446 = vpop.xlane.xlu0 %445
      %v447 = vsel %vm325, %v439, 0.0
      %448 = vadd.xlane.f32.xlu0 %v447
      %v449 = vpop.xlane.xlu0 %448
      %v450 = vsel %vm325, %v441, 0.0
      %451 = vadd.xlane.f32.xlu0 %v450
      %v452 = vpop.xlane.xlu0 %451
      %v453 = vsel %vm325, %v443, 0.0
      %454 = vadd.xlane.f32.xlu0 %v453
      %v455 = vpop.xlane.xlu0 %454
      %v456 = vrcp.pop %v446
      %v457 = vmul.f32 %v437, %v456
      %v458 = vrcp.pop %v449
      %v459 = vmul.f32 %v439, %v458
      %v460 = vrcp.pop %v452
      %v461 = vmul.f32 %v441, %v460
      %v462 = vrcp.pop %v455
      %v463 = vmul.f32 %v443, %v462
      %vm464 = vcmp.gt.f32.partialorder %v432, 0.5
      %vm465 = vcmp.gt.f32.partialorder %v433, 0.5
      %vm466 = vcmp.gt.f32.partialorder %v434, 0.5
      %vm467 = vcmp.gt.f32.partialorder %v435, 0.5
      %v468 = vadd.f32 %v307, %v321
      %v469 = vadd.f32 %v310, %v322
      %v470 = vadd.f32 %v315, %v323
      %v471 = vadd.f32 %v318, %v324
      %v472 = vsel %vm464, -inf, %v468
      %v473 = vsel %vm465, -inf, %v469
      %v474 = vsel %vm466, -inf, %v470
      %v475 = vsel %vm467, -inf, %v471
      %v476 = vsel %vm325, %v472, -inf
      %477 = vmax.xlane.f32.xlu0 %v476
      %v478 = vpop.xlane.xlu0 %477
      %v479 = vsel %vm325, %v473, -inf
      %480 = vmax.xlane.f32.xlu0 %v479
      %v481 = vpop.xlane.xlu0 %480
      %v482 = vsel %vm325, %v474, -inf
      %483 = vmax.xlane.f32.xlu0 %v482
      %v484 = vpop.xlane.xlu0 %483
      %v485 = vsel %vm325, %v475, -inf
      %486 = vmax.xlane.f32.xlu0 %v485
      %v487 = vpop.xlane.xlu0 %486
      %vm488 = vcmp.eq.f32.partialorder %v472, %v478
      %vm489 = vcmp.eq.f32.partialorder %v473, %v481
      %vm490 = vcmp.eq.f32.partialorder %v474, %v484
      %vm491 = vcmp.eq.f32.partialorder %v475, %v487
      %v492 = vsel %vm488, %v343, 4
      %v493 = vsel %vm489, %v343, 4
      %v494 = vsel %vm490, %v343, 4
      %v495 = vsel %vm491, %v343, 4
      %v496 = vsel %vm325, %v492, 2147483647
      %v497 = vand.u32 %v496, 65535
      %v498 = vshra.s32 %v496, 16
      %v499 = vcvt.s32.f32 %v497
      %v500 = vcvt.s32.f32 %v498
      %501 = vmin.xlane.f32.xlu0 %v500
      %v502 = vpop.xlane.xlu0 %501
      %vm503 = vcmp.eq.f32.partialorder %v500, %v502
      %v504 = vsel %vm503, %v499, inf
      %505 = vmin.xlane.f32.xlu0 %v504
      %v506 = vpop.xlane.xlu0 %505
      %v507 = vcvt.f32.s32 %v506
      %v508 = vcvt.f32.s32 %v502
      %v509 = vshll.u32 %v508, 16
      %v510 = vadd.s32 %v509, %v507
      %v511 = vsel %vm325, %v493, 2147483647
      %v512 = vand.u32 %v511, 65535
      %v513 = vshra.s32 %v511, 16
      %v514 = vcvt.s32.f32 %v512
      %v515 = vcvt.s32.f32 %v513
      %516 = vmin.xlane.f32.xlu0 %v515
      %v517 = vpop.xlane.xlu0 %516
      %vm518 = vcmp.eq.f32.partialorder %v515, %v517
      %v519 = vsel %vm518, %v514, inf
      %520 = vmin.xlane.f32.xlu0 %v519
      %v521 = vpop.xlane.xlu0 %520
      %v522 = vcvt.f32.s32 %v521
      %v523 = vcvt.f32.s32 %v517
      %v524 = vshll.u32 %v523, 16
      %v525 = vadd.s32 %v524, %v522
      %v526 = vsel %vm325, %v494, 2147483647
      %v527 = vand.u32 %v526, 65535
      %v528 = vshra.s32 %v526, 16
      %v529 = vcvt.s32.f32 %v527
      %v530 = vcvt.s32.f32 %v528
      %531 = vmin.xlane.f32.xlu0 %v530
      %v532 = vpop.xlane.xlu0 %531
      %vm533 = vcmp.eq.f32.partialorder %v530, %v532
      %v534 = vsel %vm533, %v529, inf
      %535 = vmin.xlane.f32.xlu0 %v534
      %v536 = vpop.xlane.xlu0 %535
      %v537 = vcvt.f32.s32 %v536
      %v538 = vcvt.f32.s32 %v532
      %v539 = vshll.u32 %v538, 16
      %v540 = vadd.s32 %v539, %v537
      %v541 = vsel %vm325, %v495, 2147483647
      %v542 = vand.u32 %v541, 65535
      %v543 = vshra.s32 %v541, 16
      %v544 = vcvt.s32.f32 %v542
      %v545 = vcvt.s32.f32 %v543
      %546 = vmin.xlane.f32.xlu0 %v545
      %v547 = vpop.xlane.xlu0 %546
      %vm548 = vcmp.eq.f32.partialorder %v545, %v547
      %v549 = vsel %vm548, %v544, inf
      %550 = vmin.xlane.f32.xlu0 %v549
      %v551 = vpop.xlane.xlu0 %550
      %v552 = vcvt.f32.s32 %v551
      %v553 = vcvt.f32.s32 %v547
      %v554 = vshll.u32 %v553, 16
      %v555 = vadd.s32 %v554, %v552
      %vm556 = vcmp.eq.s32.totalorder %v343, %v510
      %vm557 = vcmp.eq.s32.totalorder %v343, %v525
      %vm558 = vcmp.eq.s32.totalorder %v343, %v540
      %vm559 = vcmp.eq.s32.totalorder %v343, %v555
      %v560 = vsel %vm556, 1, 0
      %v561 = vsel %vm557, 1, 0
      %v562 = vsel %vm558, 1, 0
      %v563 = vsel %vm559, 1, 0
      %v564 = vcvt.s32.f32 %v560
      %v565 = vcvt.s32.f32 %v561
      %v566 = vcvt.s32.f32 %v562
      %v567 = vcvt.s32.f32 %v563
      %568 = vst.msk [vmem:[%s228] sm:$0xff] %vm325, %v307
      %569 = vst.msk [vmem:[%s228 + $0x8] sm:$0xff] %vm325, %v310
      %570 = vst.msk [vmem:[%s228 + $0x10] sm:$0xff] %vm325, %v315
      %571 = vst.msk [vmem:[%s228 + $0x18] sm:$0xff] %vm325, %v318
      %v572 = vsel %vm325, %v432, 0.0
      %v573 = vsel %vm325, %v433, 0.0
      %v574 = vadd.f32 %v572, %v573
      %v575 = vsel %vm325, %v434, 0.0
      %v576 = vadd.f32 %v574, %v575
      %v577 = vsel %vm325, %v435, 0.0
      %v578 = vadd.f32 %v576, %v577
      %v579 = vrot.slane %v578, 4
      %v580 = vadd.f32 %v578, %v579
      %v581 = vrot.slane %v580, 2
      %v582 = vadd.f32 %v580, %v581
      %v583 = vrot.slane %v582, 1
      %v584 = vadd.f32 %v582, %v583
      %v585 = vsel %vm325, %v564, 0.0
      %v586 = vsel %vm325, %v565, 0.0
      %v587 = vadd.f32 %v585, %v586
      %v588 = vsel %vm325, %v566, 0.0
      %v589 = vadd.f32 %v587, %v588
      %v590 = vsel %vm325, %v567, 0.0
      %v591 = vadd.f32 %v589, %v590
      %v592 = vrot.slane %v591, 4
      %v593 = vadd.f32 %v591, %v592
      %v594 = vrot.slane %v593, 2
      %v595 = vadd.f32 %v593, %v594
      %v596 = vrot.slane %v595, 1
      %v597 = vadd.f32 %v595, %v596
      %v598 = vsel %vm325, %v457, 0.0
      %v599 = vsel %vm325, %v459, 0.0
      %v600 = vadd.f32 %v598, %v599
      %v601 = vsel %vm325, %v461, 0.0
      %v602 = vadd.f32 %v600, %v601
      %v603 = vsel %vm325, %v463, 0.0
      %v604 = vadd.f32 %v602, %v603
      %v605 = vrot.slane %v604, 4
      %v606 = vadd.f32 %v604, %v605
      %v607 = vrot.slane %v606, 2
      %v608 = vadd.f32 %v606, %v607
      %v609 = vrot.slane %v608, 1
      %v610 = vadd.f32 %v608, %v609
      %vm611 = vcmask 1040384
      %v612 = vsel %vm611, %v584, %v597
      %vm613 = vcmask 1041408
      %v614 = vsel %vm613, %v612, %v610
      %vm615 = vcmask 1042432
      %v616 = vsel %vm615, %v614, 0.0
      %617 = vst.msk [vmem:[%s233] sm:$0xff] %vm325, %v616
      %s618 = smul.u32 4, %s16
      %p619 = scmp.lt.s32.totalorder %s618, 7
      %s620 = scalar_select %p619, %s618, 7
      %s621 = smul.addr %s620, 8
      %s622 = scalar_lea.vmem %s3, %s621
      %p623 = scmp.lt.s32.totalorder %s16, 1
      %s624 = scalar_select %p623, %s16, 1
      %s625 = smul.addr %s624, 8
      %s626 = scalar_lea.vmem %s4, %s625
      // Predicated region
      $region33: #{top2gate.2} parent=31 // pred_check
        %p627 = pneg %p107
      $region34: #{top2gate.2} parent=31 // pred_check_branch
        %629 = sbr.rel (%p627) target = $region36
      $region35: #{top2gate.2} parent=31 // pred_region
        %s630 = smul.u32 4, %s16
      $region36: #{top2gate.2} parent=31 // pred_fallthru
        _
      // Predicated region
      $region37: #{top2gate.2} parent=31 // pred_check
        %p631 = pneg %p133
      $region38: #{top2gate.2} parent=31 // pred_check_branch
        %633 = sbr.rel (%p631) target = $region40
      $region39: #{top2gate.2} parent=31 // pred_region
        _
      $region40: #{top2gate.2} parent=31 // pred_fallthru
        _
    $region32: #{top2gate.2} parent=5 // pred_fallthru
      _
    %p634 = scmp.le.s32.totalorder 2, %s11
    // Predicated region
    $region41: #{top2gate.2} parent=5 // pred_check
      %p635 = pneg %p634
    $region42: #{top2gate.2} parent=5 // pred_check_branch
      %637 = sbr.rel (%p635) target = $region44
    $region43: #{top2gate.2} parent=5 // pred_region
      %s638 = ssub.s32 %s11, 2
      // Predicated region
      $region45: #{top2gate.2} parent=43 // pred_check
        %p639 = pneg %p113
      $region46: #{top2gate.2} parent=43 // pred_check_branch
        %641 = sbr.rel (%p639) target = $region48
      $region47: #{top2gate.2} parent=43 // pred_region
        %s642 = smul.u32 4, %s17
        %p643 = scmp.lt.s32.totalorder %s642, 7
        %s644 = scalar_select %p643, %s642, 7
        %s645 = smul.addr %s644, 8
        %s646 = scalar_lea.vmem %s3, %s645
      $region48: #{top2gate.2} parent=43 // pred_fallthru
        _
      // Predicated region
      $region49: #{top2gate.2} parent=43 // pred_check
        %p647 = pneg %p139
      $region50: #{top2gate.2} parent=43 // pred_check_branch
        %649 = sbr.rel (%p647) target = $region52
      $region51: #{top2gate.2} parent=43 // pred_region
        %p650 = scmp.lt.s32.totalorder %s17, 1
        %s651 = scalar_select %p650, %s17, 1
        %s652 = smul.addr %s651, 8
        %s653 = scalar_lea.vmem %s4, %s652
      $region52: #{top2gate.2} parent=43 // pred_fallthru
        _
    $region44: #{top2gate.2} parent=5 // pred_fallthru
      _
  $region6: #{top2gate.2} parent=0 // loop_footer
    %s15 = sadd.s32 1, %s11
  $region7: #{top2gate.2} parent=0 // loop_footer_branch
    %10 = sbr.rel target = $region3
  $region8: #{top2gate.2} parent=0 // loop_exit
    _

// kernel: top2gate.3
$region0: #{top2gate.3}
  #allocation0 [shape = 'u32[]', space=smem, size = 0x4, offset = 0x4, fixed_abs, tag = 'smem constant byte address 0x4 - core index']
  #allocation1 [shape = 'u32[144,128]{1,0:T(1,128)}', space=vmem, size = 0x12000, scoped, tag = 'internal scratch']
  #allocation2 [shape = 'f32[32,8]{1,0:T(8,128)}', space=vmem, size = 0x4000, scoped, tag = 'scratch operand']
  %s0 = inlined_call_operand.vmem [shape: bf16[32,32], index: 0, kind: input, shape index: {}]
  %s1 = inlined_call_operand.vmem [shape: f32[64,4], index: 1, kind: input, shape index: {}]
  %s2 = inlined_call_operand.vmem [shape: f32[64,4], index: 2, kind: input, shape index: {}]
  %s3 = inlined_call_operand.vmem [shape: f32[2,8,4], index: 3, kind: input, shape index: {}]
  %s4 = inlined_call_operand.vmem [shape: f32[1,128], index: 4, kind: input, shape index: {}]
  %s5 = inlined_call_operand.vmem [shape: f32[64,128], index: 5, kind: output, shape index: {0}]
  %s6 = inlined_call_operand.vmem [shape: s8[64,128], index: 6, kind: output, shape index: {1}]
  %7 = xla_tuple %s5, %s6
  %s8 = sld [smem:[#allocation0]]
  $region65: #{top2gate.3} parent=0
    _
  %s10 = ssub.s32 1, %s8
  %s11 = scalar_select 0, %s10, %s8
  loop: start=0, step=1, limit=4
  $region2: #{top2gate.3} parent=0 // loop_pre_header
    _
  $region3: #{top2gate.3} parent=0 // loop_header
    %s13 = sphi 0, %s17
    %p14 = scmp.ge.s32.totalorder %s13, 4
    %s20 = sphi 0, %s32
    %s21 = sphi 0, %s28
    %s22 = sphi 0, %s20
    %s23 = sphi 0, %s21
    %s24 = sphi 0, %s22
    %s25 = sphi 0, %s23
    %s33 = sphi 0, %s33
    %s35 = sphi 0, %s33
    %s36 = sphi 0, %s35
    %s50 = sphi 0, %s36
    %s56 = sphi 0, %s58
    %s59 = sphi 0, %s56
    %s60 = sphi 0, %s59
    %s76 = sphi 0, %s60
    %s82 = sphi 0, %s84
    %s85 = sphi 0, %s82
    %s86 = sphi 0, %s85
    %s102 = sphi 0, %s86
    %s108 = sphi 0, %s110
    %s111 = sphi 0, %s108
    %s112 = sphi 0, %s111
    %s128 = sphi 0, %s112
    %s134 = sphi 0, %s136
    %s137 = sphi 0, %s134
    %s138 = sphi 0, %s137
    %s154 = sphi 0, %s138
    %s162 = sphi 0, %s164
    %s165 = sphi 0, %s162
    %s166 = sphi 0, %s165
    %s182 = sphi 0, %s166
    %s190 = sphi 0, %s192
    %s193 = sphi 0, %s190
    %s194 = sphi 0, %s193
    %s210 = sphi 0, %s194
  $region4: #{top2gate.3} parent=0 // loop_header_branch
    %16 = sbr.rel (%p14) target = $region8
  $region5: #{top2gate.3} parent=0 // loop_body
    %s18 = ssub.s32 %s13, 1
    %s19 = ssub.s32 %s13, 2
    %s26 = sadd.s32 1, %s21
    %p27 = scmp.ge.s32.totalorder %s26, 1
    %s28 = scalar_select %p27, 0, %s26
    %s29 = sadd.s32 1, %s20
    %s30 = scalar_select %p27, %s29, %s20
    %p31 = scmp.ge.s32.totalorder %s30, 2
    %s32 = scalar_select %p31, 0, %s30
    %s34 = sadd.s32 %s33, 1
    %p37 = scmp.eq.s32.totalorder %s13, 1
    %p38 = scmp.ne.s32.totalorder %s33, %s35
    %p39 = scmp.eq.s32.totalorder %s13, 0
    %p40 = por %p38, %p39
    %p41 = scmp.ne.s32.totalorder %s33, %s35
    %p42 = scmp.eq.s32.totalorder %s18, 1
    %p43 = por %p41, %p42
    %p44 = scmp.ne.s32.totalorder %s35, %s36
    %p45 = scmp.eq.s32.totalorder %s18, 0
    %p46 = por %p44, %p45
    %p47 = scmp.ne.s32.totalorder %s35, %s36
    %p48 = scmp.eq.s32.totalorder %s19, 1
    %p49 = por %p47, %p48
    %p51 = scmp.ne.s32.totalorder %s36, %s50
    %p52 = scmp.eq.s32.totalorder %s19, 0
    %p53 = por %p51, %p52
    %s54 = ssub.s32 %s20, %s32
    %p55 = scmp.eq.s32.totalorder %s54, 0
    %s57 = sadd.s32 %s56, 1
    %s58 = scalar_select %p55, %s56, %s57
    %p61 = pneg %p55
    %p62 = scmp.eq.s32.totalorder %s13, 1
    %p63 = por %p61, %p62
    %p64 = scmp.ne.s32.totalorder %s56, %s59
    %p65 = scmp.eq.s32.totalorder %s13, 0
    %p66 = por %p64, %p65
    %p67 = scmp.ne.s32.totalorder %s56, %s59
    %p68 = scmp.eq.s32.totalorder %s18, 1
    %p69 = por %p67, %p68
    %p70 = scmp.ne.s32.totalorder %s59, %s60
    %p71 = scmp.eq.s32.totalorder %s18, 0
    %p72 = por %p70, %p71
    %p73 = scmp.ne.s32.totalorder %s59, %s60
    %p74 = scmp.eq.s32.totalorder %s19, 1
    %p75 = por %p73, %p74
    %p77 = scmp.ne.s32.totalorder %s60, %s76
    %p78 = scmp.eq.s32.totalorder %s19, 0
    %p79 = por %p77, %p78
    %s80 = ssub.s32 %s20, %s32
    %p81 = scmp.eq.s32.totalorder %s80, 0
    %s83 = sadd.s32 %s82, 1
    %s84 = scalar_select %p81, %s82, %s83
    %p87 = pneg %p81
    %p88 = scmp.eq.s32.totalorder %s13, 1
    %p89 = por %p87, %p88
    %p90 = scmp.ne.s32.totalorder %s82, %s85
    %p91 = scmp.eq.s32.totalorder %s13, 0
    %p92 = por %p90, %p91
    %p93 = scmp.ne.s32.totalorder %s82, %s85
    %p94 = scmp.eq.s32.totalorder %s18, 1
    %p95 = por %p93, %p94
    %p96 = scmp.ne.s32.totalorder %s85, %s86
    %p97 = scmp.eq.s32.totalorder %s18, 0
    %p98 = por %p96, %p97
    %p99 = scmp.ne.s32.totalorder %s85, %s86
    %p100 = scmp.eq.s32.totalorder %s19, 1
    %p101 = por %p99, %p100
    %p103 = scmp.ne.s32.totalorder %s86, %s102
    %p104 = scmp.eq.s32.totalorder %s19, 0
    %p105 = por %p103, %p104
    %s106 = ssub.s32 %s20, %s32
    %p107 = scmp.eq.s32.totalorder %s106, 0
    %s109 = sadd.s32 %s108, 1
    %s110 = scalar_select %p107, %s108, %s109
    %p113 = pneg %p107
    %p114 = scmp.eq.s32.totalorder %s13, 1
    %p115 = por %p113, %p114
    %p116 = scmp.ne.s32.totalorder %s108, %s111
    %p117 = scmp.eq.s32.totalorder %s13, 0
    %p118 = por %p116, %p117
    %p119 = scmp.ne.s32.totalorder %s108, %s111
    %p120 = scmp.eq.s32.totalorder %s18, 1
    %p121 = por %p119, %p120
    %p122 = scmp.ne.s32.totalorder %s111, %s112
    %p123 = scmp.eq.s32.totalorder %s18, 0
    %p124 = por %p122, %p123
    %p125 = scmp.ne.s32.totalorder %s111, %s112
    %p126 = scmp.eq.s32.totalorder %s19, 1
    %p127 = por %p125, %p126
    %p129 = scmp.ne.s32.totalorder %s112, %s128
    %p130 = scmp.eq.s32.totalorder %s19, 0
    %p131 = por %p129, %p130
    %s132 = ssub.s32 %s21, %s28
    %p133 = scmp.eq.s32.totalorder %s132, 0
    %s135 = sadd.s32 %s134, 1
    %s136 = scalar_select %p133, %s134, %s135
    %p139 = pneg %p133
    %p140 = scmp.eq.s32.totalorder %s13, 1
    %p141 = por %p139, %p140
    %p142 = scmp.ne.s32.totalorder %s134, %s137
    %p143 = scmp.eq.s32.totalorder %s13, 0
    %p144 = por %p142, %p143
    %p145 = scmp.ne.s32.totalorder %s134, %s137
    %p146 = scmp.eq.s32.totalorder %s18, 1
    %p147 = por %p145, %p146
    %p148 = scmp.ne.s32.totalorder %s137, %s138
    %p149 = scmp.eq.s32.totalorder %s18, 0
    %p150 = por %p148, %p149
    %p151 = scmp.ne.s32.totalorder %s137, %s138
    %p152 = scmp.eq.s32.totalorder %s19, 1
    %p153 = por %p151, %p152
    %p155 = scmp.ne.s32.totalorder %s138, %s154
    %p156 = scmp.eq.s32.totalorder %s19, 0
    %p157 = por %p155, %p156
    %s158 = ssub.s32 %s20, %s32
    %s159 = ssub.s32 %s21, %s28
    %s160 = sor.u32 %s158, %s159
    %p161 = scmp.eq.s32.totalorder %s160, 0
    %s163 = sadd.s32 %s162, 1
    %s164 = scalar_select %p161, %s162, %s163
    %p167 = pneg %p161
    %p168 = scmp.eq.s32.totalorder %s13, 1
    %p169 = por %p167, %p168
    %p170 = scmp.ne.s32.totalorder %s162, %s165
    %p171 = scmp.eq.s32.totalorder %s13, 0
    %p172 = por %p170, %p171
    %p173 = scmp.ne.s32.totalorder %s162, %s165
    %p174 = scmp.eq.s32.totalorder %s18, 1
    %p175 = por %p173, %p174
    %p176 = scmp.ne.s32.totalorder %s165, %s166
    %p177 = scmp.eq.s32.totalorder %s18, 0
    %p178 = por %p176, %p177
    %p179 = scmp.ne.s32.totalorder %s165, %s166
    %p180 = scmp.eq.s32.totalorder %s19, 1
    %p181 = por %p179, %p180
    %p183 = scmp.ne.s32.totalorder %s166, %s182
    %p184 = scmp.eq.s32.totalorder %s19, 0
    %p185 = por %p183, %p184
    %s186 = ssub.s32 %s20, %s32
    %s187 = ssub.s32 %s21, %s28
    %s188 = sor.u32 %s186, %s187
    %p189 = scmp.eq.s32.totalorder %s188, 0
    %s191 = sadd.s32 %s190, 1
    %s192 = scalar_select %p189, %s190, %s191
    %p195 = pneg %p189
    %p196 = scmp.eq.s32.totalorder %s13, 1
    %p197 = por %p195, %p196
    %p198 = scmp.ne.s32.totalorder %s190, %s193
    %p199 = scmp.eq.s32.totalorder %s13, 0
    %p200 = por %p198, %p199
    %p201 = scmp.ne.s32.totalorder %s190, %s193
    %p202 = scmp.eq.s32.totalorder %s18, 1
    %p203 = por %p201, %p202
    %p204 = scmp.ne.s32.totalorder %s193, %s194
    %p205 = scmp.eq.s32.totalorder %s18, 0
    %p206 = por %p204, %p205
    %p207 = scmp.ne.s32.totalorder %s193, %s194
    %p208 = scmp.eq.s32.totalorder %s19, 1
    %p209 = por %p207, %p208
    %p211 = scmp.ne.s32.totalorder %s194, %s210
    %p212 = scmp.eq.s32.totalorder %s19, 0
    %p213 = por %p211, %p212
    %p214 = scmp.le.s32.totalorder 1, %s13
    %p215 = scmp.lt.s32.totalorder %s13, 3
    %p216 = pnand %p214, %p215
    %p217 = pneg %p216
    // Predicated region
    $region9: #{top2gate.3} parent=5 // pred_check
      _
    $region10: #{top2gate.3} parent=5 // pred_check_branch
      %219 = sbr.rel (%p216) target = $region12
    $region11: #{top2gate.3} parent=5 // pred_region
      %s220 = ssub.s32 %s13, 1
      // Predicated region
      $region13: #{top2gate.3} parent=11 // pred_check
        %p221 = pneg %p46
      $region14: #{top2gate.3} parent=11 // pred_check_branch
        %223 = sbr.rel (%p221) target = $region16
      $region15: #{top2gate.3} parent=11 // pred_region
        _
      $region16: #{top2gate.3} parent=11 // pred_fallthru
        _
      // Predicated region
      $region17: #{top2gate.3} parent=11 // pred_check
        %p224 = pneg %p150
      $region18: #{top2gate.3} parent=11 // pred_check_branch
        %226 = sbr.rel (%p224) target = $region20
      $region19: #{top2gate.3} parent=11 // pred_region
        %p227 = scmp.lt.s32.totalorder %s23, 0
        %s228 = scalar_select %p227, %s23, 0
        %s229 = scalar_lea.vmem %s4, %s228
      $region20: #{top2gate.3} parent=11 // pred_fallthru
        _
    $region12: #{top2gate.3} parent=5 // pred_fallthru
      _
    %p230 = scmp.lt.s32.totalorder %s13, 2
    // Predicated region
    $region21: #{top2gate.3} parent=5 // pred_check
      %p231 = pneg %p230
    $region22: #{top2gate.3} parent=5 // pred_check_branch
      %233 = sbr.rel (%p231) target = $region24
    $region23: #{top2gate.3} parent=5 // pred_region
      // Predicated region
      $region25: #{top2gate.3} parent=23 // pred_check
        %p234 = pneg %p66
      $region26: #{top2gate.3} parent=23 // pred_check_branch
        %236 = sbr.rel (%p234) target = $region28
      $region27: #{top2gate.3} parent=23 // pred_region
        %s237 = smul.u32 4, %s20
        %p238 = scmp.lt.s32.totalorder %s237, 7
        %s239 = scalar_select %p238, %s237, 7
        %s240 = smul.addr %s239, 8
        %s241 = scalar_lea.vmem %s1, %s240
        %s242 = smul.u32 4, %s20
      $region28: #{top2gate.3} parent=23 // pred_fallthru
        _
      // Predicated region
      $region29: #{top2gate.3} parent=23 // pred_check
        %p243 = pneg %p92
      $region30: #{top2gate.3} parent=23 // pred_check_branch
        %245 = sbr.rel (%p243) target = $region32
      $region31: #{top2gate.3} parent=23 // pred_region
        %s246 = smul.u32 4, %s20
        %p247 = scmp.lt.s32.totalorder %s246, 7
        %s248 = scalar_select %p247, %s246, 7
        %s249 = smul.addr %s248, 8
        %s250 = scalar_lea.vmem %s2, %s249
        %s251 = smul.u32 4, %s20
      $region32: #{top2gate.3} parent=23 // pred_fallthru
        _
      // Predicated region
      $region33: #{top2gate.3} parent=23 // pred_check
        %p252 = pneg %p118
      $region34: #{top2gate.3} parent=23 // pred_check_branch
        %254 = sbr.rel (%p252) target = $region36
      $region35: #{top2gate.3} parent=23 // pred_region
        %p255 = scmp.lt.s32.totalorder %s20, 1
        %s256 = scalar_select %p255, %s20, 1
        %s257 = smul.addr %s256, 8
        %s258 = scalar_lea.vmem %s3, %s257
      $region36: #{top2gate.3} parent=23 // pred_fallthru
        _
    $region24: #{top2gate.3} parent=5 // pred_fallthru
      _
    %p259 = scmp.le.s32.totalorder 1, %s13
    %p260 = scmp.lt.s32.totalorder %s13, 3
    %p261 = pnand %p259, %p260
    %p262 = pneg %p261
    // Predicated region
    $region37: #{top2gate.3} parent=5 // pred_check
      _
    $region38: #{top2gate.3} parent=5 // pred_check_branch
      %264 = sbr.rel (%p261) target = $region40
    $region39: #{top2gate.3} parent=5 // pred_region
      %s265 = ssub.s32 %s13, 1
      %p266 = pneg %p46
      %p267 = pneg %p43
      %s268 = smul.u32 4, %s22
      %p269 = scmp.lt.s32.totalorder %s268, 7
      %s270 = scalar_select %p269, %s268, 7
      %s271 = smul.addr %s270, 8
      %s272 = scalar_lea.vmem %s1, %s271
      %p273 = pneg %p72
      %p274 = pneg %p69
      %s275 = smul.u32 4, %s22
      %p276 = scmp.lt.s32.totalorder %s275, 7
      %s277 = scalar_select %p276, %s275, 7
      %s278 = smul.addr %s277, 8
      %s279 = scalar_lea.vmem %s2, %s278
      %p280 = pneg %p98
      %p281 = pneg %p95
      %p282 = scmp.lt.s32.totalorder %s22, 1
      %s283 = scalar_select %p282, %s22, 1
      %s284 = smul.addr %s283, 8
      %s285 = scalar_lea.vmem %s3, %s284
      %p286 = pneg %p124
      %p287 = pneg %p121
      %p288 = scmp.lt.s32.totalorder %s23, 0
      %s289 = scalar_select %p288, %s23, 0
      %s290 = scalar_lea.vmem %s4, %s289
      %p291 = pneg %p150
      %p292 = pneg %p147
      %p293 = pneg %p178
      %p294 = pneg %p175
      %s295 = smul.u32 4, %s22
      %p296 = scmp.lt.s32.totalorder %s295, 7
      %s297 = scalar_select %p296, %s295, 7
      %p298 = scmp.lt.s32.totalorder %s23, 0
      %s299 = scalar_select %p298, %s23, 0
      %s300 = sadd.s32 %s299, %s297
      %s301 = smul.addr %s300, 8
      %s302 = scalar_lea.vmem %s5, %s301
      %p303 = pneg %p206
      %p304 = pneg %p203
      %p305 = scmp.lt.s32.totalorder %s22, 1
      %s306 = scalar_select %p305, %s22, 1
      %p307 = scmp.lt.s32.totalorder %s23, 0
      %s308 = scalar_select %p307, %s23, 0
      %s309 = sadd.s32 %s308, %s306
      %s310 = smul.addr %s309, 8
      %s311 = scalar_lea.vmem %s6, %s310
      %s312 = smul.u32 4, %s22
      %p313 = scmp.lt.s32.totalorder %s312, 7
      %s314 = scalar_select %p313, %s312, 7
      %s315 = smul.addr %s314, 8
      %s316 = scalar_lea.vmem %s1, %s315
      %s317 = smul.u32 4, %s22
      %s318 = smul.u32 4, %s22
      %p319 = scmp.lt.s32.totalorder %s318, 7
      %s320 = scalar_select %p319, %s318, 7
      %s321 = smul.addr %s320, 8
      %s322 = scalar_lea.vmem %s2, %s321
      %s323 = smul.u32 4, %s22
      %p324 = scmp.lt.s32.totalorder %s22, 1
      %s325 = scalar_select %p324, %s22, 1
      %s326 = smul.addr %s325, 8
      %s327 = scalar_lea.vmem %s3, %s326
      %p328 = scmp.lt.s32.totalorder %s23, 0
      %s329 = scalar_select %p328, %s23, 0
      %s330 = scalar_lea.vmem %s4, %s329
      %s331 = smul.u32 4, %s22
      %p332 = scmp.lt.s32.totalorder %s331, 7
      %s333 = scalar_select %p332, %s331, 7
      %p334 = scmp.lt.s32.totalorder %s23, 0
      %s335 = scalar_select %p334, %s23, 0
      %s336 = sadd.s32 %s335, %s333
      %s337 = smul.addr %s336, 8
      %s338 = scalar_lea.vmem %s5, %s337
      %s339 = smul.u32 4, %s22
      %p340 = scmp.lt.s32.totalorder %s22, 1
      %s341 = scalar_select %p340, %s22, 1
      %p342 = scmp.lt.s32.totalorder %s23, 0
      %s343 = scalar_select %p342, %s23, 0
      %s344 = sadd.s32 %s343, %s341
      %s345 = smul.addr %s344, 8
      %s346 = scalar_lea.vmem %s6, %s345
      %p350 = scmp.eq.s32.totalorder %s23, 0
      // Predicated region
      $region41: #{top2gate.3} parent=39 // pred_check
        %p351 = pneg %p350
      $region42: #{top2gate.3} parent=39 // pred_check_branch
        %353 = sbr.rel (%p351) target = $region44
      $region43: #{top2gate.3} parent=39 // pred_region
        %v354 = vld [vmem:[%s316] sm:$0xff]
        %v355 = vld [vmem:[%s316 + $0x8] sm:$0xff]
        %v356 = vld [vmem:[%s316 + $0x10] sm:$0xff]
        %v357 = vld [vmem:[%s316 + $0x18] sm:$0xff]
        %v358 = vld [vmem:[%s322] sm:$0xff]
        %v359 = vld [vmem:[%s322 + $0x8] sm:$0xff]
        %v360 = vld [vmem:[%s322 + $0x10] sm:$0xff]
        %v361 = vld [vmem:[%s322 + $0x18] sm:$0xff]
        %vm362 = vcmask 31744
        %v363 = vsel %vm362, %v354, -inf
        %364 = vmax.xlane.f32.xlu0 %v363
        %v365 = vpop.xlane.xlu0 %364
        %v366 = vsel %vm362, %v355, -inf
        %367 = vmax.xlane.f32.xlu0 %v366
        %v368 = vpop.xlane.xlu0 %367
        %v369 = vsel %vm362, %v356, -inf
        %370 = vmax.xlane.f32.xlu0 %v369
        %v371 = vpop.xlane.xlu0 %370
        %v372 = vsel %vm362, %v357, -inf
        %373 = vmax.xlane.f32.xlu0 %v372
        %v374 = vpop.xlane.xlu0 %373
        %v375 = vsub.f32 %v354, %v365
        %v376 = vsub.f32 %v355, %v368
        %v377 = vsub.f32 %v356, %v371
        %v378 = vsub.f32 %v357, %v374
        %v379 = vlaneseq
        %v380 = vand.u32 %v379, 127
        %v381 = vsel %vm362, %v375, -inf
        %382 = vmax.xlane.f32.xlu0 %v381
        %v383 = vpop.xlane.xlu0 %382
        %v384 = vsel %vm362, %v376, -inf
        %385 = vmax.xlane.f32.xlu0 %v384
        %v386 = vpop.xlane.xlu0 %385
        %v387 = vsel %vm362, %v377, -inf
        %388 = vmax.xlane.f32.xlu0 %v387
        %v389 = vpop.xlane.xlu0 %388
        %v390 = vsel %vm362, %v378, -inf
        %391 = vmax.xlane.f32.xlu0 %v390
        %v392 = vpop.xlane.xlu0 %391
        %vm393 = vcmp.eq.f32.partialorder %v375, %v383
        %vm394 = vcmp.eq.f32.partialorder %v376, %v386
        %vm395 = vcmp.eq.f32.partialorder %v377, %v389
        %vm396 = vcmp.eq.f32.partialorder %v378, %v392
        %v397 = vsel %vm393, %v380, 4
        %v398 = vsel %vm394, %v380, 4
        %v399 = vsel %vm395, %v380, 4
        %v400 = vsel %vm396, %v380, 4
        %v401 = vsel %vm362, %v397, 2147483647
        %v402 = vand.u32 %v401, 65535
        %v403 = vshra.s32 %v401, 16
        %v404 = vcvt.s32.f32 %v402
        %v405 = vcvt.s32.f32 %v403
        %406 = vmin.xlane.f32.xlu0 %v405
        %v407 = vpop.xlane.xlu0 %406
        %vm408 = vcmp.eq.f32.partialorder %v405, %v407
        %v409 = vsel %vm408, %v404, inf
        %410 = vmin.xlane.f32.xlu0 %v409
        %v411 = vpop.xlane.xlu0 %410
        %v412 = vcvt.f32.s32 %v411
        %v413 = vcvt.f32.s32 %v407
        %v414 = vshll.u32 %v413, 16
        %v415 = vadd.s32 %v414, %v412
        %v416 = vsel %vm362, %v398, 2147483647
        %v417 = vand.u32 %v416, 65535
        %v418 = vshra.s32 %v416, 16
        %v419 = vcvt.s32.f32 %v417
        %v420 = vcvt.s32.f32 %v418
        %421 = vmin.xlane.f32.xlu0 %v420
        %v422 = vpop.xlane.xlu0 %421
        %vm423 = vcmp.eq.f32.partialorder %v420, %v422
        %v424 = vsel %vm423, %v419, inf
        %425 = vmin.xlane.f32.xlu0 %v424
        %v426 = vpop.xlane.xlu0 %425
        %v427 = vcvt.f32.s32 %v426
        %v428 = vcvt.f32.s32 %v422
        %v429 = vshll.u32 %v428, 16
        %v430 = vadd.s32 %v429, %v427
        %v431 = vsel %vm362, %v399, 2147483647
        %v432 = vand.u32 %v431, 65535
        %v433 = vshra.s32 %v431, 16
        %v434 = vcvt.s32.f32 %v432
        %v435 = vcvt.s32.f32 %v433
        %436 = vmin.xlane.f32.xlu0 %v435
        %v437 = vpop.xlane.xlu0 %436
        %vm438 = vcmp.eq.f32.partialorder %v435, %v437
        %v439 = vsel %vm438, %v434, inf
        %440 = vmin.xlane.f32.xlu0 %v439
        %v441 = vpop.xlane.xlu0 %440
        %v442 = vcvt.f32.s32 %v441
        %v443 = vcvt.f32.s32 %v437
        %v444 = vshll.u32 %v443, 16
        %v445 = vadd.s32 %v444, %v442
        %v446 = vsel %vm362, %v400, 2147483647
        %v447 = vand.u32 %v446, 65535
        %v448 = vshra.s32 %v446, 16
        %v449 = vcvt.s32.f32 %v447
        %v450 = vcvt.s32.f32 %v448
        %451 = vmin.xlane.f32.xlu0 %v450
        %v452 = vpop.xlane.xlu0 %451
        %vm453 = vcmp.eq.f32.partialorder %v450, %v452
        %v454 = vsel %vm453, %v449, inf
        %455 = vmin.xlane.f32.xlu0 %v454
        %v456 = vpop.xlane.xlu0 %455
        %v457 = vcvt.f32.s32 %v456
        %v458 = vcvt.f32.s32 %v452
        %v459 = vshll.u32 %v458, 16
        %v460 = vadd.s32 %v459, %v457
        %vm461 = vcmp.eq.s32.totalorder %v380, %v415
        %vm462 = vcmp.eq.s32.totalorder %v380, %v430
        %vm463 = vcmp.eq.s32.totalorder %v380, %v445
        %vm464 = vcmp.eq.s32.totalorder %v380, %v460
        %v465 = vsel %vm461, 1, 0
        %v466 = vsel %vm462, 1, 0
        %v467 = vsel %vm463, 1, 0
        %v468 = vsel %vm464, 1, 0
        %v469 = vcvt.s32.f32 %v465
        %v470 = vcvt.s32.f32 %v466
        %v471 = vcvt.s32.f32 %v467
        %v472 = vcvt.s32.f32 %v468
        %v473 = vmul.f32 %v375, 1.442695
        %v474 = vpow.pop %v473
        %v475 = vmul.f32 %v376, 1.442695
        %v476 = vpow.pop %v475
        %v477 = vmul.f32 %v377, 1.442695
        %v478 = vpow.pop %v477
        %v479 = vmul.f32 %v378, 1.442695
        %v480 = vpow.pop %v479
        %v481 = vsel %vm362, %v474, 0.0
        %482 = vadd.xlane.f32.xlu0 %v481
        %v483 = vpop.xlane.xlu0 %482
        %v484 = vsel %vm362, %v476, 0.0
        %485 = vadd.xlane.f32.xlu0 %v484
        %v486 = vpop.xlane.xlu0 %485
        %v487 = vsel %vm362, %v478, 0.0
        %488 = vadd.xlane.f32.xlu0 %v487
        %v489 = vpop.xlane.xlu0 %488
        %v490 = vsel %vm362, %v480, 0.0
        %491 = vadd.xlane.f32.xlu0 %v490
        %v492 = vpop.xlane.xlu0 %491
        %v493 = vrcp.pop %v483
        %v494 = vmul.f32 %v474, %v493
        %v495 = vrcp.pop %v486
        %v496 = vmul.f32 %v476, %v495
        %v497 = vrcp.pop %v489
        %v498 = vmul.f32 %v478, %v497
        %v499 = vrcp.pop %v492
        %v500 = vmul.f32 %v480, %v499
        %vm501 = vcmp.gt.f32.partialorder %v469, 0.5
        %vm502 = vcmp.gt.f32.partialorder %v470, 0.5
        %vm503 = vcmp.gt.f32.partialorder %v471, 0.5
        %vm504 = vcmp.gt.f32.partialorder %v472, 0.5
        %v505 = vadd.f32 %v354, %v358
        %v506 = vadd.f32 %v355, %v359
        %v507 = vadd.f32 %v356, %v360
        %v508 = vadd.f32 %v357, %v361
        %v509 = vsel %vm501, -inf, %v505
        %v510 = vsel %vm502, -inf, %v506
        %v511 = vsel %vm503, -inf, %v507
        %v512 = vsel %vm504, -inf, %v508
        %v513 = vsel %vm362, %v509, -inf
        %514 = vmax.xlane.f32.xlu0 %v513
        %v515 = vpop.xlane.xlu0 %514
        %v516 = vsel %vm362, %v510, -inf
        %517 = vmax.xlane.f32.xlu0 %v516
        %v518 = vpop.xlane.xlu0 %517
        %v519 = vsel %vm362, %v511, -inf
        %520 = vmax.xlane.f32.xlu0 %v519
        %v521 = vpop.xlane.xlu0 %520
        %v522 = vsel %vm362, %v512, -inf
        %523 = vmax.xlane.f32.xlu0 %v522
        %v524 = vpop.xlane.xlu0 %523
        %vm525 = vcmp.eq.f32.partialorder %v509, %v515
        %vm526 = vcmp.eq.f32.partialorder %v510, %v518
        %vm527 = vcmp.eq.f32.partialorder %v511, %v521
        %vm528 = vcmp.eq.f32.partialorder %v512, %v524
        %v529 = vsel %vm525, %v380, 4
        %v530 = vsel %vm526, %v380, 4
        %v531 = vsel %vm527, %v380, 4
        %v532 = vsel %vm528, %v380, 4
        %v533 = vsel %vm362, %v529, 2147483647
        %v534 = vand.u32 %v533, 65535
        %v535 = vshra.s32 %v533, 16
        %v536 = vcvt.s32.f32 %v534
        %v537 = vcvt.s32.f32 %v535
        %538 = vmin.xlane.f32.xlu0 %v537
        %v539 = vpop.xlane.xlu0 %538
        %vm540 = vcmp.eq.f32.partialorder %v537, %v539
        %v541 = vsel %vm540, %v536, inf
        %542 = vmin.xlane.f32.xlu0 %v541
        %v543 = vpop.xlane.xlu0 %542
        %v544 = vcvt.f32.s32 %v543
        %v545 = vcvt.f32.s32 %v539
        %v546 = vshll.u32 %v545, 16
        %v547 = vadd.s32 %v546, %v544
        %v548 = vsel %vm362, %v530, 2147483647
        %v549 = vand.u32 %v548, 65535
        %v550 = vshra.s32 %v548, 16
        %v551 = vcvt.s32.f32 %v549
        %v552 = vcvt.s32.f32 %v550
        %553 = vmin.xlane.f32.xlu0 %v552
        %v554 = vpop.xlane.xlu0 %553
        %vm555 = vcmp.eq.f32.partialorder %v552, %v554
        %v556 = vsel %vm555, %v551, inf
        %557 = vmin.xlane.f32.xlu0 %v556
        %v558 = vpop.xlane.xlu0 %557
        %v559 = vcvt.f32.s32 %v558
        %v560 = vcvt.f32.s32 %v554
        %v561 = vshll.u32 %v560, 16
        %v562 = vadd.s32 %v561, %v559
        %v563 = vsel %vm362, %v531, 2147483647
        %v564 = vand.u32 %v563, 65535
        %v565 = vshra.s32 %v563, 16
        %v566 = vcvt.s32.f32 %v564
        %v567 = vcvt.s32.f32 %v565
        %568 = vmin.xlane.f32.xlu0 %v567
        %v569 = vpop.xlane.xlu0 %568
        %vm570 = vcmp.eq.f32.partialorder %v567, %v569
        %v571 = vsel %vm570, %v566, inf
        %572 = vmin.xlane.f32.xlu0 %v571
        %v573 = vpop.xlane.xlu0 %572
        %v574 = vcvt.f32.s32 %v573
        %v575 = vcvt.f32.s32 %v569
        %v576 = vshll.u32 %v575, 16
        %v577 = vadd.s32 %v576, %v574
        %v578 = vsel %vm362, %v532, 2147483647
        %v579 = vand.u32 %v578, 65535
        %v580 = vshra.s32 %v578, 16
        %v581 = vcvt.s32.f32 %v579
        %v582 = vcvt.s32.f32 %v580
        %583 = vmin.xlane.f32.xlu0 %v582
        %v584 = vpop.xlane.xlu0 %583
        %vm585 = vcmp.eq.f32.partialorder %v582, %v584
        %v586 = vsel %vm585, %v581, inf
        %587 = vmin.xlane.f32.xlu0 %v586
        %v588 = vpop.xlane.xlu0 %587
        %v589 = vcvt.f32.s32 %v588
        %v590 = vcvt.f32.s32 %v584
        %v591 = vshll.u32 %v590, 16
        %v592 = vadd.s32 %v591, %v589
        %vm593 = vcmp.eq.s32.totalorder %v380, %v547
        %vm594 = vcmp.eq.s32.totalorder %v380, %v562
        %vm595 = vcmp.eq.s32.totalorder %v380, %v577
        %vm596 = vcmp.eq.s32.totalorder %v380, %v592
        %v597 = vsel %vm593, 1, 0
        %v598 = vsel %vm594, 1, 0
        %v599 = vsel %vm595, 1, 0
        %v600 = vsel %vm596, 1, 0
        %v601 = vcvt.s32.f32 %v597
        %v602 = vcvt.s32.f32 %v598
        %v603 = vcvt.s32.f32 %v599
        %v604 = vcvt.s32.f32 %v600
        %v605 = vadd.s32 %v547, 4
        %v606 = vadd.s32 %v562, 4
        %v607 = vadd.s32 %v577, 4
        %v608 = vadd.s32 %v592, 4
        %vm609 = vcmp.eq.s32.totalorder %v380, %v605
        %vm610 = vcmp.eq.s32.totalorder %v380, %v606
        %vm611 = vcmp.eq.s32.totalorder %v380, %v607
        %vm612 = vcmp.eq.s32.totalorder %v380, %v608
        %vm613 = vmor %vm461, %vm609
        %vm614 = vmor %vm462, %vm610
        %vm615 = vmor %vm463, %vm611
        %vm616 = vmor %vm464, %vm612
        %v617 = vsel %vm613, 1, 0
        %v618 = vsel %vm614, 1, 0
        %v619 = vsel %vm615, 1, 0
        %v620 = vsel %vm616, 1, 0
        %v621 = vcvt.s32.f32 %v617
        %v622 = vcvt.s32.f32 %v618
        %v623 = vcvt.s32.f32 %v619
        %v624 = vcvt.s32.f32 %v620
        %v625 = vpack.c.bf16 %v622, %v621
        %v626 = vpack.c.bf16 %v624, %v623
        %v627 = vld [vmem:[%s0] sm:$0xf]
        %v628 = vld [vmem:[%s0 + $0x4] sm:$0xf]
        %v629 = vld [vmem:[%s0 + $0x8] sm:$0xf]
        %v630 = vld [vmem:[%s0 + $0xc] sm:$0xf]
        %v635 = vunpack.c.l.b16 %v627
        %v636 = vunpack.c.l.b16 %v628
        %v637 = vunpack.c.l.b16 %v629
        %v638 = vunpack.c.l.b16 %v630
        %v639 = vpack.c.b16 %v636, %v635
        %v640 = vpack.c.b16 %v638, %v637
        %vm641 = vcmask 261120
        %v643 = vsel %vm641, %v639, 0
        %v646 = vsel %vm641, %v640, 0
        %648 = vmatprep.subr.bf16.mxu0 0
        %649 = vmatpush1.bf16.msra.mxu0 %v625
        %650 = vmatprep.subr.bf16.mxu0 0
        %651 = vmatpush1.bf16.msra.mxu0 %v626
        %652 = vmatprep.subr.bf16.mxu0 0
        %653 = vmatpush1.bf16.msra.mxu0 0
        %654 = vmatprep.subr.bf16.mxu0 0
        %655 = vmatpush1.bf16.msra.mxu0 0
        %656 = vmatprep.subr.bf16.mxu0 0
        %657 = vmatpush1.bf16.msra.mxu0 0
        %658 = vmatprep.subr.bf16.mxu0 0
        %659 = vmatpush1.bf16.msra.mxu0 0
        %660 = vmatprep.subr.bf16.mxu0 0
        %661 = vmatpush1.bf16.msra.mxu0 0
        %662 = vmatprep.subr.bf16.mxu0 0
        %663 = vmatpush1.bf16.msra.mxu0 0
        %664 = vmatprep.subr.bf16.mxu0 0
        %665 = vmatpush1.bf16.msra.mxu0 0
        %666 = vmatprep.subr.bf16.mxu0 0
        %667 = vmatpush1.bf16.msra.mxu0 0
        %668 = vmatprep.subr.bf16.mxu0 0
        %669 = vmatpush1.bf16.msra.mxu0 0
        %670 = vmatprep.subr.bf16.mxu0 0
        %671 = vmatpush1.bf16.msra.mxu0 0
        %672 = vmatprep.subr.bf16.mxu0 0
        %673 = vmatpush1.bf16.msra.mxu0 0
        %674 = vmatprep.subr.bf16.mxu0 0
        %675 = vmatpush1.bf16.msra.mxu0 0
        %676 = vmatprep.subr.bf16.mxu0 0
        %677 = vmatpush1.bf16.msra.mxu0 0
        %678 = vmatprep.subr.bf16.mxu0 0
        %679 = vmatpush1.bf16.msra.mxu0 0
        %680 = vmatprep.mubr.bf16.mxu0 0
        %681 = vmatmul.mubr.bf16.gmra.mrb[0].mxu0 %v643
        %v682 = vpop.f32.mrb[0].mxu0
        %v683 = vadd.f32 0.0, %v682
        %v684 = vpop.f32.mrb[0].mxu0
        %v685 = vpop.f32.mrb[0].mxu0
        %v686 = vadd.f32 0.0, %v685
        %v687 = vpop.f32.mrb[0].mxu0
        %688 = vmatprep.mubr.bf16.mxu0 0
        %689 = vmatmul.mubr.bf16.gmra.mrb[0].mxu0 %v646
        %v690 = vpop.f32.mrb[0].mxu0
        %v691 = vadd.f32 0.0, %v690
        %v692 = vpop.f32.mrb[0].mxu0
        %v693 = vpop.f32.mrb[0].mxu0
        %v694 = vadd.f32 0.0, %v693
        %v695 = vpop.f32.mrb[0].mxu0
        %696 = vdwg.mxu0
        %v697 = vld [vmem:[%s327] sm:$0xff]
        %v698 = vsub.f32 %v683, 1.0
        %v699 = vsub.f32 %v686, 1.0
        %v700 = vsub.f32 %v691, 1.0
        %v701 = vsub.f32 %v694, 1.0
        %v702 = vlaneseq
        %v703 = vshrl.u32 %v702, 7
        %v704 = vsub.s32 0, %v703
        %v705 = vrot.slane %v697, %v704
        %v706 = vadd.f32 %v698, %v705
        %v707 = vadd.f32 %v699, %v705
        %v708 = vadd.f32 %v700, %v705
        %v709 = vadd.f32 %v701, %v705
        %v710 = vlaneseq
        %v711 = vshrl.u32 %v710, 7
        %v712 = vsub.s32 1, %v711
        %v713 = vrot.slane %v697, %v712
        %715 = vrot.lane.b32.xlu0 %v713, 4
        %v716 = vpop.permute.xlu0 %715
        %v718 = vadd.f32 %v698, %v716
        %v719 = vadd.f32 %v699, %v716
        %v720 = vadd.f32 %v700, %v716
        %v721 = vadd.f32 %v701, %v716
        %vm722 = vcmp.lt.f32.partialorder %v706, 32.0
        %vm723 = vcmp.lt.f32.partialorder %v707, 32.0
        %vm724 = vcmp.lt.f32.partialorder %v708, 32.0
        %vm725 = vcmp.lt.f32.partialorder %v709, 32.0
        %v726 = vsel %vm722, 1, 0
        %v727 = vsel %vm723, 1, 0
        %v728 = vsel %vm724, 1, 0
        %v729 = vsel %vm725, 1, 0
        %v730 = vcvt.s32.f32 %v726
        %v731 = vcvt.s32.f32 %v727
        %v732 = vcvt.s32.f32 %v728
        %v733 = vcvt.s32.f32 %v729
        %v734 = vmul.f32 %v469, %v730
        %v735 = vmul.f32 %v470, %v731
        %v736 = vmul.f32 %v471, %v732
        %v737 = vmul.f32 %v472, %v733
        %vm738 = vcmp.lt.f32.partialorder %v718, 32.0
        %vm739 = vcmp.lt.f32.partialorder %v719, 32.0
        %vm740 = vcmp.lt.f32.partialorder %v720, 32.0
        %vm741 = vcmp.lt.f32.partialorder %v721, 32.0
        %v742 = vsel %vm738, 1, 0
        %v743 = vsel %vm739, 1, 0
        %v744 = vsel %vm740, 1, 0
        %v745 = vsel %vm741, 1, 0
        %v746 = vcvt.s32.f32 %v742
        %v747 = vcvt.s32.f32 %v743
        %v748 = vcvt.s32.f32 %v744
        %v749 = vcvt.s32.f32 %v745
        %754 = vrot.lane.b32.xlu0 %v746, 124
        %v755 = vpop.permute.xlu0 %754
        %756 = vrot.lane.b32.xlu0 %v747, 124
        %v757 = vpop.permute.xlu0 %756
        %758 = vrot.lane.b32.xlu0 %v748, 124
        %v759 = vpop.permute.xlu0 %758
        %760 = vrot.lane.b32.xlu0 %v749, 124
        %v761 = vpop.permute.xlu0 %760
        %v766 = vmul.f32 %v601, %v755
        %v767 = vmul.f32 %v602, %v757
        %v768 = vmul.f32 %v603, %v759
        %v769 = vmul.f32 %v604, %v761
        %v770 = vmul.f32 %v706, %v734
        %v771 = vmul.f32 %v707, %v735
        %v772 = vmul.f32 %v708, %v736
        %v773 = vmul.f32 %v709, %v737
        %v774 = vsel %vm362, %v770, 0.0
        %775 = vadd.xlane.f32.xlu0 %v774
        %v776 = vpop.xlane.xlu0 %775
        %v777 = vsel %vm362, %v771, 0.0
        %778 = vadd.xlane.f32.xlu0 %v777
        %v779 = vpop.xlane.xlu0 %778
        %v780 = vsel %vm362, %v772, 0.0
        %781 = vadd.xlane.f32.xlu0 %v780
        %v782 = vpop.xlane.xlu0 %781
        %v783 = vsel %vm362, %v773, 0.0
        %784 = vadd.xlane.f32.xlu0 %v783
        %v785 = vpop.xlane.xlu0 %784
        %790 = vrot.lane.b32.xlu0 %v766, 4
        %v791 = vpop.permute.xlu0 %790
        %792 = vrot.lane.b32.xlu0 %v767, 4
        %v793 = vpop.permute.xlu0 %792
        %794 = vrot.lane.b32.xlu0 %v768, 4
        %v795 = vpop.permute.xlu0 %794
        %796 = vrot.lane.b32.xlu0 %v769, 4
        %v797 = vpop.permute.xlu0 %796
        %v802 = vmul.f32 %v718, %v791
        %v803 = vmul.f32 %v719, %v793
        %v804 = vmul.f32 %v720, %v795
        %v805 = vmul.f32 %v721, %v797
        %810 = vrot.lane.b32.xlu0 %v802, 124
        %v811 = vpop.permute.xlu0 %810
        %812 = vrot.lane.b32.xlu0 %v803, 124
        %v813 = vpop.permute.xlu0 %812
        %814 = vrot.lane.b32.xlu0 %v804, 124
        %v815 = vpop.permute.xlu0 %814
        %816 = vrot.lane.b32.xlu0 %v805, 124
        %v817 = vpop.permute.xlu0 %816
        %v822 = vsel %vm362, %v811, 0.0
        %823 = vadd.xlane.f32.xlu0 %v822
        %v824 = vpop.xlane.xlu0 %823
        %v825 = vsel %vm362, %v813, 0.0
        %826 = vadd.xlane.f32.xlu0 %v825
        %v827 = vpop.xlane.xlu0 %826
        %v828 = vsel %vm362, %v815, 0.0
        %829 = vadd.xlane.f32.xlu0 %v828
        %v830 = vpop.xlane.xlu0 %829
        %v831 = vsel %vm362, %v817, 0.0
        %832 = vadd.xlane.f32.xlu0 %v831
        %v833 = vpop.xlane.xlu0 %832
        %v834 = vmul.f32 %v494, %v734
        %v835 = vmul.f32 %v496, %v735
        %v836 = vmul.f32 %v498, %v736
        %v837 = vmul.f32 %v500, %v737
        %v838 = vsel %vm362, %v834, 0.0
        %839 = vadd.xlane.f32.xlu0 %v838
        %v840 = vpop.xlane.xlu0 %839
        %v841 = vsel %vm362, %v835, 0.0
        %842 = vadd.xlane.f32.xlu0 %v841
        %v843 = vpop.xlane.xlu0 %842
        %v844 = vsel %vm362, %v836, 0.0
        %845 = vadd.xlane.f32.xlu0 %v844
        %v846 = vpop.xlane.xlu0 %845
        %v847 = vsel %vm362, %v837, 0.0
        %848 = vadd.xlane.f32.xlu0 %v847
        %v849 = vpop.xlane.xlu0 %848
        %v850 = vmul.f32 %v494, %v766
        %v851 = vmul.f32 %v496, %v767
        %v852 = vmul.f32 %v498, %v768
        %v853 = vmul.f32 %v500, %v769
        %v854 = vsel %vm362, %v850, 0.0
        %855 = vadd.xlane.f32.xlu0 %v854
        %v856 = vpop.xlane.xlu0 %855
        %v857 = vsel %vm362, %v851, 0.0
        %858 = vadd.xlane.f32.xlu0 %v857
        %v859 = vpop.xlane.xlu0 %858
        %v860 = vsel %vm362, %v852, 0.0
        %861 = vadd.xlane.f32.xlu0 %v860
        %v862 = vpop.xlane.xlu0 %861
        %v863 = vsel %vm362, %v853, 0.0
        %864 = vadd.xlane.f32.xlu0 %v863
        %v865 = vpop.xlane.xlu0 %864
        %v866 = vadd.f32 %v840, %v856
        %v867 = vadd.f32 %v843, %v859
        %v868 = vadd.f32 %v846, %v862
        %v869 = vadd.f32 %v849, %v865
        %v870 = vmax.f32 %v866, 1.1920929e-07
        %v871 = vmax.f32 %v867, 1.1920929e-07
        %v872 = vmax.f32 %v868, 1.1920929e-07
        %v873 = vmax.f32 %v869, 1.1920929e-07
        %v874 = vrcp.pop %v870
        %v875 = vmul.f32 %v840, %v874
        %v876 = vrcp.pop %v871
        %v877 = vmul.f32 %v843, %v876
        %v878 = vrcp.pop %v872
        %v879 = vmul.f32 %v846, %v878
        %v880 = vrcp.pop %v873
        %v881 = vmul.f32 %v849, %v880
        %v882 = vmul.f32 %v856, %v874
        %v883 = vmul.f32 %v859, %v876
        %v884 = vmul.f32 %v862, %v878
        %v885 = vmul.f32 %v865, %v880
        %v886 = vcvt.s32.f32 %v415
        %v887 = vcvt.s32.f32 %v430
        %v888 = vcvt.s32.f32 %v445
        %v889 = vcvt.s32.f32 %v460
        %v890 = vmul.f32 %v886, 32.0
        %v891 = vmul.f32 %v887, 32.0
        %v892 = vmul.f32 %v888, 32.0
        %v893 = vmul.f32 %v889, 32.0
        %v894 = vadd.f32 %v890, %v776
        %v895 = vadd.f32 %v891, %v779
        %v896 = vadd.f32 %v892, %v782
        %v897 = vadd.f32 %v893, %v785
        %v898 = vcvt.s32.f32 %v547
        %v899 = vcvt.s32.f32 %v562
        %v900 = vcvt.s32.f32 %v577
        %v901 = vcvt.s32.f32 %v592
        %v902 = vmul.f32 %v898, 32.0
        %v903 = vmul.f32 %v899, 32.0
        %v904 = vmul.f32 %v900, 32.0
        %v905 = vmul.f32 %v901, 32.0
        %v906 = vadd.f32 %v902, %v824
        %v907 = vadd.f32 %v903, %v827
        %v908 = vadd.f32 %v904, %v830
        %v909 = vadd.f32 %v905, %v833
        %vm910 = vcmask 7168
        %v911 = vsel %vm910, %v894, %v906
        %v912 = vsel %vm910, %v895, %v907
        %v913 = vsel %vm910, %v896, %v908
        %v914 = vsel %vm910, %v897, %v909
        %vm915 = vcmask 15360
        %v916 = vsel %vm915, %v911, %v875
        %v917 = vsel %vm915, %v912, %v877
        %v918 = vsel %vm915, %v913, %v879
        %v919 = vsel %vm915, %v914, %v881
        %vm920 = vcmask 23552
        %v921 = vsel %vm920, %v916, %v882
        %v922 = vsel %vm920, %v917, %v883
        %v923 = vsel %vm920, %v918, %v884
        %v924 = vsel %vm920, %v919, %v885
        %v925 = vsel %vm362, %v921, 0.0
        %v926 = vsel %vm362, %v922, 0.0
        %v927 = vsel %vm362, %v923, 0.0
        %v928 = vsel %vm362, %v924, 0.0
        %vm929 = vcmask 64512
        %930 = vst.msk [vmem:[#allocation2] sm:$0xff] %vm929, %v925
        %931 = vst.msk [vmem:[#allocation2 + $0x8] sm:$0xff] %vm929, %v926
        %932 = vst.msk [vmem:[#allocation2 + $0x10] sm:$0xff] %vm929, %v927
        %933 = vst.msk [vmem:[#allocation2 + $0x18] sm:$0xff] %vm929, %v928
      $region44: #{top2gate.3} parent=39 // pred_fallthru
        _
      %v934 = vld [vmem:[%s330] sm:$0x1]
      %v935 = vld [vmem:[#allocation2] sm:$0xff]
      %v936 = vld [vmem:[#allocation2 + $0x8] sm:$0xff]
      %v937 = vld [vmem:[#allocation2 + $0x10] sm:$0xff]
      %v938 = vld [vmem:[#allocation2 + $0x18] sm:$0xff]
      %v940 = vlaneseq
      %v941 = vshrl.u32 %v940, 7
      %v942 = vsub.s32 0, %v941
      %v943 = vrot.slane %v934, %v942
      %946 = vset.pattern.permute.xlu0 0
      %947 = vperm.xlu0 %946, %v935
      %v948 = vpop.permute.xlu0 %947
      %951 = vset.pattern.permute.xlu0 0
      %952 = vperm.xlu0 %951, %v936
      %v953 = vpop.permute.xlu0 %952
      %956 = vset.pattern.permute.xlu0 0
      %957 = vperm.xlu0 %956, %v937
      %v958 = vpop.permute.xlu0 %957
      %961 = vset.pattern.permute.xlu0 0
      %962 = vperm.xlu0 %961, %v938
      %v963 = vpop.permute.xlu0 %962
      %vm965 = vcmp.eq.f32.partialorder %v943, %v948
      %vm966 = vcmp.eq.f32.partialorder %v943, %v953
      %vm967 = vcmp.eq.f32.partialorder %v943, %v958
      %vm968 = vcmp.eq.f32.partialorder %v943, %v963
      %969 = vset.pattern.permute.xlu0 1
      %970 = vperm.xlu0 %969, %v935
      %v971 = vpop.permute.xlu0 %970
      %973 = vset.pattern.permute.xlu0 1
      %974 = vperm.xlu0 %973, %v936
      %v975 = vpop.permute.xlu0 %974
      %977 = vset.pattern.permute.xlu0 1
      %978 = vperm.xlu0 %977, %v937
      %v979 = vpop.permute.xlu0 %978
      %981 = vset.pattern.permute.xlu0 1
      %982 = vperm.xlu0 %981, %v938
      %v983 = vpop.permute.xlu0 %982
      %vm985 = vcmp.eq.f32.partialorder %v943, %v971
      %vm986 = vcmp.eq.f32.partialorder %v943, %v975
      %vm987 = vcmp.eq.f32.partialorder %v943, %v979
      %vm988 = vcmp.eq.f32.partialorder %v943, %v983
      %v989 = vsel %vm965, 1, 0
      %v990 = vsel %vm966, 1, 0
      %v991 = vsel %vm967, 1, 0
      %v992 = vsel %vm968, 1, 0
      %v993 = vcvt.s32.f32 %v989
      %v994 = vcvt.s32.f32 %v990
      %v995 = vcvt.s32.f32 %v991
      %v996 = vcvt.s32.f32 %v992
      %997 = vset.pattern.permute.xlu0 2
      %998 = vperm.xlu0 %997, %v935
      %v999 = vpop.permute.xlu0 %998
      %1001 = vset.pattern.permute.xlu0 2
      %1002 = vperm.xlu0 %1001, %v936
      %v1003 = vpop.permute.xlu0 %1002
      %1005 = vset.pattern.permute.xlu0 2
      %1006 = vperm.xlu0 %1005, %v937
      %v1007 = vpop.permute.xlu0 %1006
      %1009 = vset.pattern.permute.xlu0 2
      %1010 = vperm.xlu0 %1009, %v938
      %v1011 = vpop.permute.xlu0 %1010
      %v1013 = vmul.f32 %v999, %v993
      %v1014 = vmul.f32 %v1003, %v994
      %v1015 = vmul.f32 %v1007, %v995
      %v1016 = vmul.f32 %v1011, %v996
      %v1017 = vsel %vm985, 1, 0
      %v1018 = vsel %vm986, 1, 0
      %v1019 = vsel %vm987, 1, 0
      %v1020 = vsel %vm988, 1, 0
      %v1021 = vcvt.s32.f32 %v1017
      %v1022 = vcvt.s32.f32 %v1018
      %v1023 = vcvt.s32.f32 %v1019
      %v1024 = vcvt.s32.f32 %v1020
      %1025 = vset.pattern.permute.xlu0 3
      %1026 = vperm.xlu0 %1025, %v935
      %v1027 = vpop.permute.xlu0 %1026
      %1029 = vset.pattern.permute.xlu0 3
      %1030 = vperm.xlu0 %1029, %v936
      %v1031 = vpop.permute.xlu0 %1030
      %1033 = vset.pattern.permute.xlu0 3
      %1034 = vperm.xlu0 %1033, %v937
      %v1035 = vpop.permute.xlu0 %1034
      %1037 = vset.pattern.permute.xlu0 3
      %1038 = vperm.xlu0 %1037, %v938
      %v1039 = vpop.permute.xlu0 %1038
      %v1041 = vmul.f32 %v1027, %v1021
      %v1042 = vmul.f32 %v1031, %v1022
      %v1043 = vmul.f32 %v1035, %v1023
      %v1044 = vmul.f32 %v1039, %v1024
      %v1045 = vadd.f32 %v1013, %v1041
      %v1046 = vadd.f32 %v1014, %v1042
      %v1047 = vadd.f32 %v1015, %v1043
      %v1048 = vadd.f32 %v1016, %v1044
      %1049 = vst [vmem:[%s338] sm:$0xff] %v1045
      %1050 = vst [vmem:[%s338 + $0x8] sm:$0xff] %v1046
      %1051 = vst [vmem:[%s338 + $0x10] sm:$0xff] %v1047
      %1052 = vst [vmem:[%s338 + $0x18] sm:$0xff] %v1048
      %vm1053 = vcmp.gt.f32.partialorder %v935, 0.0
      %vm1054 = vcmp.gt.f32.partialorder %v936, 0.0
      %vm1055 = vcmp.gt.f32.partialorder %v937, 0.0
      %vm1056 = vcmp.gt.f32.partialorder %v938, 0.0
      %v1057 = vsel %vm1053, 1, 0
      %v1058 = vsel %vm1054, 1, 0
      %v1059 = vsel %vm1055, 1, 0
      %v1060 = vsel %vm1056, 1, 0
      %1061 = vset.pattern.permute.xlu0 2
      %1062 = vperm.xlu0 %1061, %v1057
      %v1063 = vpop.permute.xlu0 %1062
      %1064 = vset.pattern.permute.xlu0 2
      %1065 = vperm.xlu0 %1064, %v1058
      %v1066 = vpop.permute.xlu0 %1065
      %1067 = vset.pattern.permute.xlu0 2
      %1068 = vperm.xlu0 %1067, %v1059
      %v1069 = vpop.permute.xlu0 %1068
      %1070 = vset.pattern.permute.xlu0 2
      %1071 = vperm.xlu0 %1070, %v1060
      %v1072 = vpop.permute.xlu0 %1071
      %vm1073 = vcmp.eq.s32.totalorder %v1063, 1
      %vm1074 = vcmp.eq.s32.totalorder %v1066, 1
      %vm1075 = vcmp.eq.s32.totalorder %v1069, 1
      %vm1076 = vcmp.eq.s32.totalorder %v1072, 1
      %vm1077 = vmand %vm965, %vm1073
      %vm1078 = vmand %vm966, %vm1074
      %vm1079 = vmand %vm967, %vm1075
      %vm1080 = vmand %vm968, %vm1076
      %1081 = vset.pattern.permute.xlu0 3
      %1082 = vperm.xlu0 %1081, %v1057
      %v1083 = vpop.permute.xlu0 %1082
      %1084 = vset.pattern.permute.xlu0 3
      %1085 = vperm.xlu0 %1084, %v1058
      %v1086 = vpop.permute.xlu0 %1085
      %1087 = vset.pattern.permute.xlu0 3
      %1088 = vperm.xlu0 %1087, %v1059
      %v1089 = vpop.permute.xlu0 %1088
      %1090 = vset.pattern.permute.xlu0 3
      %1091 = vperm.xlu0 %1090, %v1060
      %v1092 = vpop.permute.xlu0 %1091
      %vm1093 = vcmp.eq.s32.totalorder %v1083, 1
      %vm1094 = vcmp.eq.s32.totalorder %v1086, 1
      %vm1095 = vcmp.eq.s32.totalorder %v1089, 1
      %vm1096 = vcmp.eq.s32.totalorder %v1092, 1
      %vm1097 = vmand %vm985, %vm1093
      %vm1098 = vmand %vm986, %vm1094
      %vm1099 = vmand %vm987, %vm1095
      %vm1100 = vmand %vm988, %vm1096
      %vm1101 = vmor %vm1077, %vm1097
      %vm1102 = vmor %vm1078, %vm1098
      %vm1103 = vmor %vm1079, %vm1099
      %vm1104 = vmor %vm1080, %vm1100
      %vm1105 = vmpackc.low %vm1102, %vm1101
      %vm1106 = vmpackc.low %vm1104, %vm1103
      %vm1107 = vmpackc.even %vm1106, %vm1105
      %v1108 = vsel %vm1107, 16843009, 0
      %1109 = vst [vmem:[%s346] sm:$0xff] %v1108
      %s1110 = smul.u32 4, %s22
      %p1111 = scmp.lt.s32.totalorder %s1110, 7
      %s1112 = scalar_select %p1111, %s1110, 7
      %p1113 = scmp.lt.s32.totalorder %s23, 0
      %s1114 = scalar_select %p1113, %s23, 0
      %s1115 = sadd.s32 %s1114, %s1112
      %s1116 = smul.addr %s1115, 8
      %s1117 = scalar_lea.vmem %s5, %s1116
      %p1118 = scmp.lt.s32.totalorder %s22, 1
      %s1119 = scalar_select %p1118, %s22, 1
      %p1120 = scmp.lt.s32.totalorder %s23, 0
      %s1121 = scalar_select %p1120, %s23, 0
      %s1122 = sadd.s32 %s1121, %s1119
      %s1123 = smul.addr %s1122, 8
      %s1124 = scalar_lea.vmem %s6, %s1123
      // Predicated region
      $region45: #{top2gate.3} parent=39 // pred_check
        %p1125 = pneg %p175
      $region46: #{top2gate.3} parent=39 // pred_check_branch
        %1127 = sbr.rel (%p1125) target = $region48
      $region47: #{top2gate.3} parent=39 // pred_region
        %s1128 = smul.u32 4, %s22
      $region48: #{top2gate.3} parent=39 // pred_fallthru
        _
      // Predicated region
      $region49: #{top2gate.3} parent=39 // pred_check
        %p1129 = pneg %p203
      $region50: #{top2gate.3} parent=39 // pred_check_branch
        %1131 = sbr.rel (%p1129) target = $region52
      $region51: #{top2gate.3} parent=39 // pred_region
        _
      $region52: #{top2gate.3} parent=39 // pred_fallthru
        _
    $region40: #{top2gate.3} parent=5 // pred_fallthru
      _
    %p1132 = scmp.le.s32.totalorder 2, %s13
    // Predicated region
    $region53: #{top2gate.3} parent=5 // pred_check
      %p1133 = pneg %p1132
    $region54: #{top2gate.3} parent=5 // pred_check_branch
      %1135 = sbr.rel (%p1133) target = $region56
    $region55: #{top2gate.3} parent=5 // pred_region
      %s1136 = ssub.s32 %s13, 2
      // Predicated region
      $region57: #{top2gate.3} parent=55 // pred_check
        %p1137 = pneg %p181
      $region58: #{top2gate.3} parent=55 // pred_check_branch
        %1139 = sbr.rel (%p1137) target = $region60
      $region59: #{top2gate.3} parent=55 // pred_region
        %s1140 = smul.u32 4, %s24
        %p1141 = scmp.lt.s32.totalorder %s1140, 7
        %s1142 = scalar_select %p1141, %s1140, 7
        %p1143 = scmp.lt.s32.totalorder %s25, 0
        %s1144 = scalar_select %p1143, %s25, 0
        %s1145 = sadd.s32 %s1144, %s1142
        %s1146 = smul.addr %s1145, 8
        %s1147 = scalar_lea.vmem %s5, %s1146
      $region60: #{top2gate.3} parent=55 // pred_fallthru
        _
      // Predicated region
      $region61: #{top2gate.3} parent=55 // pred_check
        %p1148 = pneg %p209
      $region62: #{top2gate.3} parent=55 // pred_check_branch
        %1150 = sbr.rel (%p1148) target = $region64
      $region63: #{top2gate.3} parent=55 // pred_region
        %p1151 = scmp.lt.s32.totalorder %s24, 1
        %s1152 = scalar_select %p1151, %s24, 1
        %p1153 = scmp.lt.s32.totalorder %s25, 0
        %s1154 = scalar_select %p1153, %s25, 0
        %s1155 = sadd.s32 %s1154, %s1152
        %s1156 = smul.addr %s1155, 8
        %s1157 = scalar_lea.vmem %s6, %s1156
      $region64: #{top2gate.3} parent=55 // pred_fallthru
        _
    $region56: #{top2gate.3} parent=5 // pred_fallthru
      _
  $region6: #{top2gate.3} parent=0 // loop_footer
    %s17 = sadd.s32 1, %s13
  $region7: #{top2gate.3} parent=0 // loop_footer_branch
    %12 = sbr.rel target = $region3
  $region8: #{top2gate.3} parent=0 // loop_exit
    _

</llo_original>
